<compile_context>
chip_gen: v7x
topology: tpu7x:2x2x1
jax: 0.10.0
libtpu: 0.0.40
codegen_flags: <defaults>
</compile_context>

<pallas_src>
import functools

import jax
import jax.numpy as jnp
import numpy as np
from jax.experimental import pallas as pl
from jax.experimental.pallas import tpu as pltpu

# ----------------------------- configuration --------------------------------
BATCH = 2
SEQ = 8
MODEL_DIM = 32
NUM_HEADS = 4
HEAD_DIM = MODEL_DIM // NUM_HEADS
FF_DIM = 64
LN_EPS = 1e-6


# ------------------------------ kernel body ----------------------------------
def _layer_norm(x, g, b, eps=LN_EPS):
    mu = jnp.mean(x, axis=-1, keepdims=True)
    var = jnp.mean((x - mu) ** 2, axis=-1, keepdims=True)
    return (x - mu) * jax.lax.rsqrt(var + eps) * g + b


def encoder_layer_kernel(x_ref, mask_ref, w_ref, vec_ref, out_ref,
                         *, batch, seq, num_heads, ff_dim):
    D = x_ref.shape[-1]
    FF = ff_dim
    H = num_heads
    Dh = D // H
    BS = batch * seq
    inv_scale = jnp.float32(1.0 / np.sqrt(Dh))

    x = x_ref[...]                                       # (B*S, D)

    # ---- carve packed parameters (static slices are free) ----
    w_qkv = w_ref[:, 0:3 * D]                            # (D, 3D)  [Wq|Wk|Wv]
    w_o = w_ref[:, 3 * D:4 * D]                          # (D, D)
    w_1 = w_ref[:, 4 * D:4 * D + FF]                     # (D, FF)
    w_2t = w_ref[:, 4 * D + FF:4 * D + 2 * FF]           # (D, FF) == W2^T

    ln1_g = vec_ref[0:1, 0:D]
    ln1_b = vec_ref[1:2, 0:D]
    ln2_g = vec_ref[2:3, 0:D]
    ln2_b = vec_ref[3:4, 0:D]
    b_qkv = vec_ref[4:5, 0:3 * D]
    b_o = vec_ref[5:6, 0:D]
    b_1 = vec_ref[6:7, 0:FF]
    b_2 = vec_ref[7:8, 0:D]

    # Additive attention bias, computed ONCE. (Note: a fully-masked query row
    # would softmax to uniform over masked keys; not triggered by this test.)
    mbias = jnp.where(mask_ref[...] > 0,
                      jnp.float32(0.0), jnp.float32(-1e9))       # (B, S, S)
    mbias = jnp.broadcast_to(mbias[:, None, :, :],
                             (batch, H, seq, seq)).reshape(batch * H, seq, seq)

    # -------- sublayer 0: x + self_attn(LN(x), mask) --------
    xn = _layer_norm(x, ln1_g, ln1_b)
    qkv = jnp.dot(xn, w_qkv, preferred_element_type=jnp.float32) + b_qkv

    def split_heads(t):                                  # (B*S, D) -> (B*H, S, Dh)
        return (t.reshape(batch, seq, H, Dh)
                 .transpose(0, 2, 1, 3)
                 .reshape(batch * H, seq, Dh))

    q = split_heads(qkv[:, 0:D] * inv_scale)             # scale folded into q once
    k = split_heads(qkv[:, D:2 * D])
    v = split_heads(qkv[:, 2 * D:3 * D])

    # All heads at once: one score einsum, one softmax, one context einsum.
    s = jnp.einsum("bqd,bkd->bqk", q, k,
                   preferred_element_type=jnp.float32) + mbias   # (B*H, S, S)
    s = s - jnp.max(s, axis=-1, keepdims=True)
    p = jnp.exp(s)
    p = p / jnp.sum(p, axis=-1, keepdims=True)           # exact divide (correctness)
    ctx = jnp.einsum("bqk,bkd->bqd", p, v,
                     preferred_element_type=jnp.float32)         # (B*H, S, Dh)
    ctx = (ctx.reshape(batch, H, seq, Dh)
              .transpose(0, 2, 1, 3)
              .reshape(BS, D))                                   # merge heads

    attn = jnp.dot(ctx, w_o, preferred_element_type=jnp.float32) + b_o
    # TODO(synk): dropout treated as identity (eval mode / p=0).
    y = x + attn

    # -------- sublayer 1: y + fc_net(LN(y)) --------
    yn = _layer_norm(y, ln2_g, ln2_b)
    hdn = jnp.maximum(
        jnp.dot(yn, w_1, preferred_element_type=jnp.float32) + b_1, 0.0)
    ff = jax.lax.dot_general(hdn, w_2t, (((1,), (1,)), ((), ())),
                             preferred_element_type=jnp.float32) + b_2

    out_ref[...] = (y + ff).astype(out_ref.dtype)


# ------------------------------- wrapper --------------------------------------
def encoder_layer(x, mask, params, num_heads=NUM_HEADS):
    B, S, D = x.shape
    FF = params["w1"].shape[1]
    H = num_heads
    BS, Dh = B * S, D // H

    # Pack every (D, *) matrix into ONE buffer: [Wq|Wk|Wv | Wo | W1 | W2^T].
    w_pack = jnp.concatenate(
        [params["wq"], params["wk"], params["wv"],
         params["wo"], params["w1"], params["w2"].T], axis=1)    # (D, 4D+2FF)

    # Pack all LayerNorm / bias vectors into ONE (8, max(3D, FF)) buffer.
    W = max(3 * D, FF)

    def row(v):
        return jnp.pad(v, ((0, 0), (0, W - v.shape[1])))

    vec_pack = jnp.concatenate(
        [row(params["ln1_g"]), row(params["ln1_b"]),
         row(params["ln2_g"]), row(params["ln2_b"]),
         row(jnp.concatenate([params["bq"], params["bk"], params["bv"]], axis=1)),
         row(params["bo"]), row(params["b1"]), row(params["b2"])],
        axis=0)                                                  # (8, W)

    kern = functools.partial(encoder_layer_kernel,
                             batch=B, seq=S, num_heads=H, ff_dim=FF)

    flops = (2 * BS * D * 3 * D            # fused QKV projection
             + 2 * B * H * S * S * Dh * 2  # scores + context
             + 2 * BS * D * D              # output projection
             + 2 * BS * D * FF * 2)        # two feed-forward matmuls
    bytes_accessed = 4 * (x.size + mask.size + w_pack.size
                          + vec_pack.size + x.size)

    out = pl.pallas_call(
        kern,
        out_shape=jax.ShapeDtypeStruct((B * S, D), x.dtype),
        # Gridless: whole problem in one invocation, everything VMEM-resident.
        in_specs=[pl.BlockSpec(memory_space=pltpu.MemorySpace.VMEM)] * 4,
        out_specs=pl.BlockSpec(memory_space=pltpu.MemorySpace.VMEM),
        cost_estimate=pl.CostEstimate(flops=flops,
                                      transcendentals=B * H * S * S,
                                      bytes_accessed=bytes_accessed),
    )(x.reshape(B * S, D), mask, w_pack, vec_pack)

    return out.reshape(B, S, D)


# --------------------------- plain-JAX reference -------------------------------
def reference_encoder_layer(x, mask, p, num_heads=NUM_HEADS):
    B, S, D = x.shape
    Dh = D // num_heads

    def ln(z, g, b):
        mu = jnp.mean(z, axis=-1, keepdims=True)
        var = jnp.mean((z - mu) ** 2, axis=-1, keepdims=True)
        return (z - mu) / jnp.sqrt(var + LN_EPS) * g + b

    xn = ln(x, p["ln1_g"][0], p["ln1_b"][0])
    q = xn @ p["wq"] + p["bq"][0]
    k = xn @ p["wk"] + p["bk"][0]
    v = xn @ p["wv"] + p["bv"][0]
    q = q.reshape(B, S, num_heads, Dh).transpose(0, 2, 1, 3)
    k = k.reshape(B, S, num_heads, Dh).transpose(0, 2, 1, 3)
    v = v.reshape(B, S, num_heads, Dh).transpose(0, 2, 1, 3)
    scores = jnp.einsum("bhqd,bhkd->bhqk", q, k) / np.sqrt(Dh)
    scores = jnp.where(mask[:, None, :, :] > 0, scores, -1e9)
    attn = jax.nn.softmax(scores, axis=-1)
    ctx = jnp.einsum("bhqk,bhkd->bhqd", attn, v)
    ctx = ctx.transpose(0, 2, 1, 3).reshape(B, S, D)
    ctx = ctx @ p["wo"] + p["bo"][0]
    y = x + ctx

    yn = ln(y, p["ln2_g"][0], p["ln2_b"][0])
    ff = jnp.maximum(yn @ p["w1"] + p["b1"][0], 0.0) @ p["w2"] + p["b2"][0]
    return y + ff


# ------------------------------- main ------------------------------------------
if __name__ == "__main__":
    key = jax.random.PRNGKey(0)
    keys = jax.random.split(key, 16)

    def w(k, shape, scale=0.05):
        return jax.random.normal(k, shape, jnp.float32) * scale

    params = {
        "ln1_g": jnp.ones((1, MODEL_DIM), jnp.float32),
        "ln1_b": jnp.zeros((1, MODEL_DIM), jnp.float32),
        "wq": w(keys[0], (MODEL_DIM, MODEL_DIM)),
        "bq": w(keys[1], (1, MODEL_DIM)),
        "wk": w(keys[2], (MODEL_DIM, MODEL_DIM)),
        "bk": w(keys[3], (1, MODEL_DIM)),
        "wv": w(keys[4], (MODEL_DIM, MODEL_DIM)),
        "bv": w(keys[5], (1, MODEL_DIM)),
        "wo": w(keys[6], (MODEL_DIM, MODEL_DIM)),
        "bo": w(keys[7], (1, MODEL_DIM)),
        "ln2_g": jnp.ones((1, MODEL_DIM), jnp.float32),
        "ln2_b": jnp.zeros((1, MODEL_DIM), jnp.float32),
        "w1": w(keys[8], (MODEL_DIM, FF_DIM)),
        "b1": w(keys[9], (1, FF_DIM)),
        "w2": w(keys[10], (FF_DIM, MODEL_DIM)),
        "b2": w(keys[11], (1, MODEL_DIM)),
    }

    x = jax.random.normal(keys[12], (BATCH, SEQ, MODEL_DIM), jnp.float32)

    # padding mask: batch 0 has all 8 tokens valid, batch 1 has 5 valid tokens
    lens = np.array([SEQ, 5])
    mask_np = np.zeros((BATCH, SEQ, SEQ), np.float32)
    for b in range(BATCH):
        mask_np[b, :, : lens[b]] = 1.0
    mask = jnp.asarray(mask_np)

    out = encoder_layer(x, mask, params)
    out = jax.block_until_ready(out)

    ref = jax.block_until_ready(reference_encoder_layer(x, mask, params))
    np.testing.assert_allclose(np.asarray(out), np.asarray(ref),
                               rtol=1e-4, atol=1e-4)
    print("KERNEL_OK")
</pallas_src>

<mosaic_0001>
module attributes {stable_mosaic.version = 11 : i64} {
  func.func @encoder_layer_kernel(%arg0: memref<16x32xf32, #tpu.memory_space<vmem>>, %arg1: memref<2x8x8xf32, #tpu.memory_space<vmem>>, %arg2: memref<32x256xf32, #tpu.memory_space<vmem>>, %arg3: memref<8x96xf32, #tpu.memory_space<vmem>>, %arg4: memref<16x32xf32, #tpu.memory_space<vmem>>) attributes {dimension_semantics = [], scalar_prefetch = 0 : i64, scratch_operands = 0 : i64, tpu.core_type = #tpu.core_type<tc>} {
    %c0 = arith.constant 0 : index
    %c0_0 = arith.constant 0 : index
    %0 = vector.load %arg0[%c0, %c0_0] : memref<16x32xf32, #tpu.memory_space<vmem>>, vector<16x32xf32>
    %c0_1 = arith.constant 0 : index
    %c0_2 = arith.constant 0 : index
    %1 = vector.load %arg2[%c0_1, %c0_2] : memref<32x256xf32, #tpu.memory_space<vmem>>, vector<32x96xf32>
    %c0_3 = arith.constant 0 : index
    %c96 = arith.constant 96 : index
    %2 = vector.load %arg2[%c0_3, %c96] : memref<32x256xf32, #tpu.memory_space<vmem>>, vector<32x32xf32>
    %c0_4 = arith.constant 0 : index
    %c128 = arith.constant 128 : index
    %3 = vector.load %arg2[%c0_4, %c128] : memref<32x256xf32, #tpu.memory_space<vmem>>, vector<32x64xf32>
    %c0_5 = arith.constant 0 : index
    %c192 = arith.constant 192 : index
    %4 = vector.load %arg2[%c0_5, %c192] : memref<32x256xf32, #tpu.memory_space<vmem>>, vector<32x64xf32>
    %c0_6 = arith.constant 0 : index
    %c0_7 = arith.constant 0 : index
    %5 = vector.load %arg3[%c0_6, %c0_7] : memref<8x96xf32, #tpu.memory_space<vmem>>, vector<1x32xf32>
    %c1 = arith.constant 1 : index
    %c0_8 = arith.constant 0 : index
    %6 = vector.load %arg3[%c1, %c0_8] : memref<8x96xf32, #tpu.memory_space<vmem>>, vector<1x32xf32>
    %c2 = arith.constant 2 : index
    %c0_9 = arith.constant 0 : index
    %7 = vector.load %arg3[%c2, %c0_9] : memref<8x96xf32, #tpu.memory_space<vmem>>, vector<1x32xf32>
    %c3 = arith.constant 3 : index
    %c0_10 = arith.constant 0 : index
    %8 = vector.load %arg3[%c3, %c0_10] : memref<8x96xf32, #tpu.memory_space<vmem>>, vector<1x32xf32>
    %c4 = arith.constant 4 : index
    %c0_11 = arith.constant 0 : index
    %9 = vector.load %arg3[%c4, %c0_11] : memref<8x96xf32, #tpu.memory_space<vmem>>, vector<1x96xf32>
    %c5 = arith.constant 5 : index
    %c0_12 = arith.constant 0 : index
    %10 = vector.load %arg3[%c5, %c0_12] : memref<8x96xf32, #tpu.memory_space<vmem>>, vector<1x32xf32>
    %c6 = arith.constant 6 : index
    %c0_13 = arith.constant 0 : index
    %11 = vector.load %arg3[%c6, %c0_13] : memref<8x96xf32, #tpu.memory_space<vmem>>, vector<1x64xf32>
    %c7 = arith.constant 7 : index
    %c0_14 = arith.constant 0 : index
    %12 = vector.load %arg3[%c7, %c0_14] : memref<8x96xf32, #tpu.memory_space<vmem>>, vector<1x32xf32>
    %c0_15 = arith.constant 0 : index
    %c0_16 = arith.constant 0 : index
    %c0_17 = arith.constant 0 : index
    %13 = vector.load %arg1[%c0_15, %c0_16, %c0_17] : memref<2x8x8xf32, #tpu.memory_space<vmem>>, vector<2x8x8xf32>
    %cst = arith.constant 0.000000e+00 : f32
    %14 = vector.broadcast %cst : f32 to vector<2x8x8xf32>
    %15 = arith.cmpf ogt, %13, %14 : vector<2x8x8xf32>
    %cst_18 = arith.constant 0.000000e+00 : f32
    %cst_19 = arith.constant -1.000000e+09 : f32
    %16 = vector.broadcast %cst_18 : f32 to vector<2x8x8xf32>
    %17 = vector.broadcast %cst_19 : f32 to vector<2x8x8xf32>
    %18 = arith.select %15, %16, %17 : vector<2x8x8xi1>, vector<2x8x8xf32>
    %19 = vector.shape_cast %18 : vector<2x8x8xf32> to vector<2x1x8x8xf32>
    %20 = vector.shape_cast %19 : vector<2x1x8x8xf32> to vector<2x1x8x8xf32>
    %21 = vector.broadcast %20 : vector<2x1x8x8xf32> to vector<2x4x8x8xf32>
    %22 = vector.shape_cast %21 : vector<2x4x8x8xf32> to vector<8x8x8xf32>
    %cst_20 = arith.constant dense<0.000000e+00> : vector<16xf32>
    %23 = vector.multi_reduction <add>, %0, %cst_20 [1] : vector<16x32xf32> to vector<16xf32>
    %24 = vector.shape_cast %23 : vector<16xf32> to vector<16x1xf32>
    %cst_21 = arith.constant 3.200000e+01 : f32
    %25 = vector.broadcast %cst_21 : f32 to vector<16x1xf32>
    %26 = arith.divf %24, %25 : vector<16x1xf32>
    %27 = vector.broadcast %26 : vector<16x1xf32> to vector<16x32xf32>
    %28 = arith.subf %0, %27 : vector<16x32xf32>
    %29 = arith.mulf %28, %28 : vector<16x32xf32>
    %cst_22 = arith.constant dense<0.000000e+00> : vector<16xf32>
    %30 = vector.multi_reduction <add>, %29, %cst_22 [1] : vector<16x32xf32> to vector<16xf32>
    %31 = vector.shape_cast %30 : vector<16xf32> to vector<16x1xf32>
    %cst_23 = arith.constant 3.200000e+01 : f32
    %32 = vector.broadcast %cst_23 : f32 to vector<16x1xf32>
    %33 = arith.divf %31, %32 : vector<16x1xf32>
    %34 = vector.broadcast %26 : vector<16x1xf32> to vector<16x32xf32>
    %35 = arith.subf %0, %34 : vector<16x32xf32>
    %cst_24 = arith.constant 9.99999997E-7 : f32
    %36 = vector.broadcast %cst_24 : f32 to vector<16x1xf32>
    %37 = arith.addf %33, %36 : vector<16x1xf32>
    %38 = math.rsqrt %37 : vector<16x1xf32>
    %39 = vector.broadcast %38 : vector<16x1xf32> to vector<16x32xf32>
    %40 = arith.mulf %35, %39 : vector<16x32xf32>
    %41 = vector.broadcast %5 : vector<1x32xf32> to vector<16x32xf32>
    %42 = arith.mulf %40, %41 : vector<16x32xf32>
    %43 = vector.broadcast %6 : vector<1x32xf32> to vector<16x32xf32>
    %44 = arith.addf %42, %43 : vector<16x32xf32>
    %cst_25 = arith.constant dense<0.000000e+00> : vector<16x96xf32>
    %45 = tpu.matmul %44, %1, %cst_25 {dimension_numbers = #tpu.dot_dimension_numbers<[1], [0], [0], [1], [0, 0, 1, 1], [], []>} : vector<16x32xf32>, vector<32x96xf32>, vector<16x96xf32> -> vector<16x96xf32>
    %46 = vector.broadcast %9 : vector<1x96xf32> to vector<16x96xf32>
    %47 = arith.addf %45, %46 : vector<16x96xf32>
    %48 = vector.extract_strided_slice %47 {offsets = [0, 0], sizes = [16, 32], strides = [1, 1]} : vector<16x96xf32> to vector<16x32xf32>
    %cst_26 = arith.constant 0.353553385 : f32
    %49 = vector.broadcast %cst_26 : f32 to vector<16x32xf32>
    %50 = arith.mulf %48, %49 : vector<16x32xf32>
    %51 = vector.shape_cast %50 : vector<16x32xf32> to vector<2x8x4x8xf32>
    %52 = tpu.transpose %51, [0, 2, 1, 3] : vector<2x8x4x8xf32> -> vector<2x4x8x8xf32>
    %53 = vector.shape_cast %52 : vector<2x4x8x8xf32> to vector<8x8x8xf32>
    %54 = vector.extract_strided_slice %47 {offsets = [0, 32], sizes = [16, 32], strides = [1, 1]} : vector<16x96xf32> to vector<16x32xf32>
    %55 = vector.shape_cast %54 : vector<16x32xf32> to vector<2x8x4x8xf32>
    %56 = tpu.transpose %55, [0, 2, 1, 3] : vector<2x8x4x8xf32> -> vector<2x4x8x8xf32>
    %57 = vector.shape_cast %56 : vector<2x4x8x8xf32> to vector<8x8x8xf32>
    %58 = vector.extract_strided_slice %47 {offsets = [0, 64], sizes = [16, 32], strides = [1, 1]} : vector<16x96xf32> to vector<16x32xf32>
    %59 = vector.shape_cast %58 : vector<16x32xf32> to vector<2x8x4x8xf32>
    %60 = tpu.transpose %59, [0, 2, 1, 3] : vector<2x8x4x8xf32> -> vector<2x4x8x8xf32>
    %61 = vector.shape_cast %60 : vector<2x4x8x8xf32> to vector<8x8x8xf32>
    "tpu.trace_start"() <{level = 10 : i32, message = "bqd,bkd->bqk"}> : () -> ()
    %cst_27 = arith.constant dense<0.000000e+00> : vector<8x8x8xf32>
    %62 = tpu.matmul %53, %57, %cst_27 {dimension_numbers = #tpu.dot_dimension_numbers<[2], [2], [1], [1], [0, 0, 0, 1, 1, 1], [0], [0]>} : vector<8x8x8xf32>, vector<8x8x8xf32>, vector<8x8x8xf32> -> vector<8x8x8xf32>
    "tpu.trace_stop"() : () -> ()
    %63 = arith.addf %62, %22 : vector<8x8x8xf32>
    %cst_28 = arith.constant dense<0xFF800000> : vector<8x8xf32>
    %64 = vector.multi_reduction <maximumf>, %63, %cst_28 [2] : vector<8x8x8xf32> to vector<8x8xf32>
    %65 = vector.shape_cast %64 : vector<8x8xf32> to vector<8x8x1xf32>
    %66 = vector.broadcast %65 : vector<8x8x1xf32> to vector<8x8x8xf32>
    %67 = arith.subf %63, %66 : vector<8x8x8xf32>
    %68 = math.exp %67 : vector<8x8x8xf32>
    %cst_29 = arith.constant dense<0.000000e+00> : vector<8x8xf32>
    %69 = vector.multi_reduction <add>, %68, %cst_29 [2] : vector<8x8x8xf32> to vector<8x8xf32>
    %70 = vector.shape_cast %69 : vector<8x8xf32> to vector<8x8x1xf32>
    %71 = vector.broadcast %70 : vector<8x8x1xf32> to vector<8x8x8xf32>
    %72 = arith.divf %68, %71 : vector<8x8x8xf32>
    "tpu.trace_start"() <{level = 10 : i32, message = "bqk,bkd->bqd"}> : () -> ()
    %cst_30 = arith.constant dense<0.000000e+00> : vector<8x8x8xf32>
    %73 = tpu.matmul %72, %61, %cst_30 {dimension_numbers = #tpu.dot_dimension_numbers<[2], [1], [1], [2], [0, 0, 0, 1, 1, 2], [0], [0]>} : vector<8x8x8xf32>, vector<8x8x8xf32>, vector<8x8x8xf32> -> vector<8x8x8xf32>
    "tpu.trace_stop"() : () -> ()
    %74 = vector.shape_cast %73 : vector<8x8x8xf32> to vector<2x4x8x8xf32>
    %75 = tpu.transpose %74, [0, 2, 1, 3] : vector<2x4x8x8xf32> -> vector<2x8x4x8xf32>
    %76 = vector.shape_cast %75 : vector<2x8x4x8xf32> to vector<16x32xf32>
    %cst_31 = arith.constant dense<0.000000e+00> : vector<16x32xf32>
    %77 = tpu.matmul %76, %2, %cst_31 {dimension_numbers = #tpu.dot_dimension_numbers<[1], [0], [0], [1], [0, 0, 1, 1], [], []>} : vector<16x32xf32>, vector<32x32xf32>, vector<16x32xf32> -> vector<16x32xf32>
    %78 = vector.broadcast %10 : vector<1x32xf32> to vector<16x32xf32>
    %79 = arith.addf %77, %78 : vector<16x32xf32>
    %80 = arith.addf %0, %79 : vector<16x32xf32>
    %cst_32 = arith.constant dense<0.000000e+00> : vector<16xf32>
    %81 = vector.multi_reduction <add>, %80, %cst_32 [1] : vector<16x32xf32> to vector<16xf32>
    %82 = vector.shape_cast %81 : vector<16xf32> to vector<16x1xf32>
    %cst_33 = arith.constant 3.200000e+01 : f32
    %83 = vector.broadcast %cst_33 : f32 to vector<16x1xf32>
    %84 = arith.divf %82, %83 : vector<16x1xf32>
    %85 = vector.broadcast %84 : vector<16x1xf32> to vector<16x32xf32>
    %86 = arith.subf %80, %85 : vector<16x32xf32>
    %87 = arith.mulf %86, %86 : vector<16x32xf32>
    %cst_34 = arith.constant dense<0.000000e+00> : vector<16xf32>
    %88 = vector.multi_reduction <add>, %87, %cst_34 [1] : vector<16x32xf32> to vector<16xf32>
    %89 = vector.shape_cast %88 : vector<16xf32> to vector<16x1xf32>
    %cst_35 = arith.constant 3.200000e+01 : f32
    %90 = vector.broadcast %cst_35 : f32 to vector<16x1xf32>
    %91 = arith.divf %89, %90 : vector<16x1xf32>
    %92 = vector.broadcast %84 : vector<16x1xf32> to vector<16x32xf32>
    %93 = arith.subf %80, %92 : vector<16x32xf32>
    %cst_36 = arith.constant 9.99999997E-7 : f32
    %94 = vector.broadcast %cst_36 : f32 to vector<16x1xf32>
    %95 = arith.addf %91, %94 : vector<16x1xf32>
    %96 = math.rsqrt %95 : vector<16x1xf32>
    %97 = vector.broadcast %96 : vector<16x1xf32> to vector<16x32xf32>
    %98 = arith.mulf %93, %97 : vector<16x32xf32>
    %99 = vector.broadcast %7 : vector<1x32xf32> to vector<16x32xf32>
    %100 = arith.mulf %98, %99 : vector<16x32xf32>
    %101 = vector.broadcast %8 : vector<1x32xf32> to vector<16x32xf32>
    %102 = arith.addf %100, %101 : vector<16x32xf32>
    %cst_37 = arith.constant dense<0.000000e+00> : vector<16x64xf32>
    %103 = tpu.matmul %102, %3, %cst_37 {dimension_numbers = #tpu.dot_dimension_numbers<[1], [0], [0], [1], [0, 0, 1, 1], [], []>} : vector<16x32xf32>, vector<32x64xf32>, vector<16x64xf32> -> vector<16x64xf32>
    %104 = vector.broadcast %11 : vector<1x64xf32> to vector<16x64xf32>
    %105 = arith.addf %103, %104 : vector<16x64xf32>
    %cst_38 = arith.constant 0.000000e+00 : f32
    %106 = vector.broadcast %cst_38 : f32 to vector<16x64xf32>
    %107 = arith.maximumf %105, %106 : vector<16x64xf32>
    %cst_39 = arith.constant dense<0.000000e+00> : vector<16x32xf32>
    %108 = tpu.matmul %107, %4, %cst_39 {dimension_numbers = #tpu.dot_dimension_numbers<[1], [1], [0], [0], [0, 0, 1, 0], [], []>} : vector<16x64xf32>, vector<32x64xf32>, vector<16x32xf32> -> vector<16x32xf32>
    %109 = vector.broadcast %12 : vector<1x32xf32> to vector<16x32xf32>
    %110 = arith.addf %108, %109 : vector<16x32xf32>
    %111 = arith.addf %80, %110 : vector<16x32xf32>
    %c0_40 = arith.constant 0 : index
    %c0_41 = arith.constant 0 : index
    %112 = vector.load %arg4[%c0_40, %c0_41] : memref<16x32xf32, #tpu.memory_space<vmem>>, vector<16x32xf32>
    tpu.vector_store %arg4[%c0_40, %c0_41], %111 {strides = array<i32>} : memref<16x32xf32, #tpu.memory_space<vmem>>, vector<16x32xf32>,
    return
  }
}

</mosaic_0001>

<llo_original>
// kernel: tpu_custom_call.1
$region0: #{tpu_custom_call.1}
  #allocation0 [shape = 'u32[]', space=smem, size = 0x4, offset = 0x4, fixed_abs, tag = 'smem constant byte address 0x4 - core index']
  #allocation1 [shape = 'u32[144,128]{1,0:T(1,128)}', space=vmem, size = 0x12000, scoped, tag = 'internal scratch']
  %s0 = inlined_call_operand.hbm [shape: f32[16,32], index: 0, kind: input, shape index: {}]
  %s1 = inlined_call_operand.hbm [shape: f32[2,8,8], index: 1, kind: input, shape index: {}]
  %s2 = inlined_call_operand.hbm [shape: f32[32,256], index: 2, kind: input, shape index: {}]
  %s3 = inlined_call_operand.vmem [shape: f32[8,96], index: 3, kind: input, shape index: {}]
  %s4 = inlined_call_operand.hbm [shape: f32[16,32], index: 4, kind: output, shape index: {}]
  %s5 = sld [smem:[#allocation0]]
  $region38: #{tpu_custom_call.1} parent=0
    _
  %s7 = ssub.s32 1, %s5
  %s8 = scalar_select 0, %s7, %s5
  $region1: #{tpu_custom_call.1} parent=0
    #allocation2 [shape = 'u8[8192]{0}', space=vmem, size = 0x2000, scoped, tag = 'input window, operand 0, single buffered']
    #allocation3 [shape = 's32[1]{0}', space=sflag, size = 0x4, scoped, tag = 'scoped memory for tpu_custom_call.1']
    #allocation4 [shape = 's32[1]{0}', space=sflag, size = 0x4, scoped, tag = 'scoped memory for tpu_custom_call.1']
    #allocation5 [shape = 'u8[8192]{0}', space=vmem, size = 0x2000, scoped, tag = 'input window, operand 1, single buffered']
    #allocation6 [shape = 's32[1]{0}', space=sflag, size = 0x4, scoped, tag = 'scoped memory for tpu_custom_call.1']
    #allocation7 [shape = 'u8[32768]{0}', space=vmem, size = 0x8000, scoped, tag = 'input window, operand 2, single buffered']
    #allocation8 [shape = 'u8[8192]{0}', space=vmem, size = 0x2000, scoped, tag = 'output window, operand 0, single buffered']
    %9 = vsyncpa [#allocation3], 0
    %10 = vsyncpa [#allocation6], 0
    %11 = vsyncpa [#allocation4], 0
    // Predicated region
    $region2: #{tpu_custom_call.1} parent=1 // pred_check
      _
    $region3: #{tpu_custom_call.1} parent=1 // pred_check_branch
      %13 = sbr.rel (0) target = $region5
    $region4: #{tpu_custom_call.1} parent=1 // pred_region
      %s15 = ssub.s32 256, 256
      %16 = vsyncadd [#allocation3], %s15
      %s17 = sshll.u32 [#allocation2], 4
      %s18 = int_to_ptr.vmem [resolvable:$true] %s17
      %23 = dma.hbm_to_vmem [thread:$0]  %s0, 256, %s18, [#allocation3], 128, 128, 8
    $region5: #{tpu_custom_call.1} parent=1 // pred_fallthru
      _
    // Predicated region
    $region6: #{tpu_custom_call.1} parent=1 // pred_check
      _
    $region7: #{tpu_custom_call.1} parent=1 // pred_check_branch
      %25 = sbr.rel (0) target = $region9
    $region8: #{tpu_custom_call.1} parent=1 // pred_region
      %s27 = ssub.s32 256, 256
      %28 = vsyncadd [#allocation6], %s27
      %s29 = sshll.u32 [#allocation5], 4
      %s30 = int_to_ptr.vmem [resolvable:$true] %s29
      %35 = dma.hbm_to_vmem [thread:$0]  %s1, 256, %s30, [#allocation6], 128, 128, 8
    $region9: #{tpu_custom_call.1} parent=1 // pred_fallthru
      _
    // Predicated region
    $region10: #{tpu_custom_call.1} parent=1 // pred_check
      _
    $region11: #{tpu_custom_call.1} parent=1 // pred_check_branch
      %37 = sbr.rel (0) target = $region13
    $region12: #{tpu_custom_call.1} parent=1 // pred_region
      %s39 = ssub.s32 1024, 1024
      %40 = vsyncadd [#allocation6], %s39
      %s41 = sshll.u32 [#allocation7], 4
      %s42 = int_to_ptr.vmem [resolvable:$true] %s41
      %47 = dma.hbm_to_vmem [thread:$0]  %s2, 1024, %s42, [#allocation6], 256, 256, 16
    $region13: #{tpu_custom_call.1} parent=1 // pred_fallthru
      _
    // Predicated region
    $region14: #{tpu_custom_call.1} parent=1 // pred_check
      _
    $region15: #{tpu_custom_call.1} parent=1 // pred_check_branch
      %49 = sbr.rel (0) target = $region17
    $region16: #{tpu_custom_call.1} parent=1 // pred_region
      _
    $region17: #{tpu_custom_call.1} parent=1 // pred_fallthru
      _
    // Predicated region
    $region18: #{tpu_custom_call.1} parent=1 // pred_check
      _
    $region19: #{tpu_custom_call.1} parent=1 // pred_check_branch
      %51 = sbr.rel (0) target = $region21
    $region20: #{tpu_custom_call.1} parent=1 // pred_region
      %52 = dma.done [#allocation3], 256
    $region21: #{tpu_custom_call.1} parent=1 // pred_fallthru
      _
    // Predicated region
    $region22: #{tpu_custom_call.1} parent=1 // pred_check
      _
    $region23: #{tpu_custom_call.1} parent=1 // pred_check_branch
      %54 = sbr.rel (0) target = $region25
    $region24: #{tpu_custom_call.1} parent=1 // pred_region
      %55 = dma.done [#allocation6], 256
    $region25: #{tpu_custom_call.1} parent=1 // pred_fallthru
      _
    // Predicated region
    $region26: #{tpu_custom_call.1} parent=1 // pred_check
      _
    $region27: #{tpu_custom_call.1} parent=1 // pred_check_branch
      %57 = sbr.rel (0) target = $region29
    $region28: #{tpu_custom_call.1} parent=1 // pred_region
      %58 = dma.done [#allocation6], 1024
    $region29: #{tpu_custom_call.1} parent=1 // pred_fallthru
      _
    %v59 = vld [vmem:[#allocation2] sm:$0xff]
    %v60 = vld [vmem:[#allocation2 + $0x8] sm:$0xff]
    %v61 = vld [vmem:[#allocation7] sm:$0xff]
    %v62 = vld [vmem:[#allocation7 + $0x10] sm:$0xff]
    %v63 = vld [vmem:[#allocation7 + $0x20] sm:$0xff]
    %v64 = vld [vmem:[#allocation7 + $0x30] sm:$0xff]
    %v65 = vld [vmem:[#allocation7 + $0x8] sm:$0xff]
    %v66 = vld [vmem:[#allocation7 + $0x18] sm:$0xff]
    %v67 = vld [vmem:[#allocation7 + $0x28] sm:$0xff]
    %v68 = vld [vmem:[#allocation7 + $0x38] sm:$0xff]
    %v69 = vld [vmem:[%s3] sm:$0x1]
    %v70 = vld [vmem:[%s3 + $0x1] sm:$0x1]
    %v71 = vld [vmem:[%s3 + $0x2] sm:$0x1]
    %v72 = vld [vmem:[%s3 + $0x3] sm:$0x1]
    %v73 = vld [vmem:[%s3 + $0x4] sm:$0x1]
    %v74 = vld [vmem:[%s3 + $0x5] sm:$0x1]
    %v75 = vld [vmem:[%s3 + $0x6] sm:$0x1]
    %v76 = vld [vmem:[%s3 + $0x7] sm:$0x1]
    %v77 = vld [vmem:[#allocation5] sm:$0xff]
    %v78 = vld [vmem:[#allocation5 + $0x8] sm:$0xff]
    %vm79 = vcmp.gt.f32.partialorder %v77, 0.0
    %vm80 = vcmp.gt.f32.partialorder %v78, 0.0
    %v81 = vsel %vm79, 0.0, -1e+09
    %v82 = vsel %vm80, 0.0, -1e+09
    %vm83 = vcmask 261120
    %v84 = vsel %vm83, %v59, 0.0
    %85 = vadd.xlane.f32.xlu0 %v84
    %v86 = vpop.xlane.xlu0 %85
    %v87 = vsel %vm83, %v60, 0.0
    %88 = vadd.xlane.f32.xlu0 %v87
    %v89 = vpop.xlane.xlu0 %88
    %v90 = vrcp.pop 32.0
    %v91 = vmul.f32 %v86, %v90
    %v92 = vmul.f32 %v89, %v90
    %v93 = vsub.f32 %v59, %v91
    %v94 = vsub.f32 %v60, %v92
    %v95 = vmul.f32 %v93, %v93
    %v96 = vmul.f32 %v94, %v94
    %v97 = vsel %vm83, %v95, 0.0
    %98 = vadd.xlane.f32.xlu0 %v97
    %v99 = vpop.xlane.xlu0 %98
    %v100 = vsel %vm83, %v96, 0.0
    %101 = vadd.xlane.f32.xlu0 %v100
    %v102 = vpop.xlane.xlu0 %101
    %v103 = vmul.f32 %v99, %v90
    %v104 = vmul.f32 %v102, %v90
    %v105 = vadd.f32 %v103, 1e-06
    %v106 = vadd.f32 %v104, 1e-06
    %v107 = vrsqrt.pop %v105
    %v108 = vrsqrt.pop %v106
    %v109 = vmul.f32 %v93, %v107
    %v110 = vmul.f32 %v94, %v108
    %v111 = vlaneseq
    %v112 = vshrl.u32 %v111, 7
    %v113 = vsub.s32 0, %v112
    %v114 = vrot.slane %v69, %v113
    %v115 = vmul.f32 %v109, %v114
    %v116 = vmul.f32 %v110, %v114
    %v117 = vlaneseq
    %v118 = vshrl.u32 %v117, 7
    %v119 = vsub.s32 0, %v118
    %v120 = vrot.slane %v70, %v119
    %v121 = vadd.f32 %v115, %v120
    %v122 = vadd.f32 %v116, %v120
    %v123 = vlaneseq
    %v124 = vshrl.u32 %v123, 7
    %v125 = vsub.s32 0, %v124
    %v126 = vrot.slane %v73, %v125
    %v128 = vsel %vm83, %v121, 0
    %v131 = vsel %vm83, %v122, 0
    %133 = vmatprep.subr.mxu0 0.0
    %134 = vmatpush1.msra.mxu0 %v61
    %135 = vmatprep.subr.mxu0 0.0
    %136 = vmatpush1.msra.mxu0 %v62
    %137 = vmatprep.subr.mxu0 0.0
    %138 = vmatpush1.msra.mxu0 %v63
    %139 = vmatprep.subr.mxu0 0.0
    %140 = vmatpush1.msra.mxu0 %v64
    %141 = vmatprep.subr.mxu0 0.0
    %142 = vmatpush1.msra.mxu0 0.0
    %143 = vmatprep.subr.mxu0 0.0
    %144 = vmatpush1.msra.mxu0 0.0
    %145 = vmatprep.subr.mxu0 0.0
    %146 = vmatpush1.msra.mxu0 0.0
    %147 = vmatprep.subr.mxu0 0.0
    %148 = vmatpush1.msra.mxu0 0.0
    %149 = vmatprep.subr.mxu0 0.0
    %150 = vmatpush1.msra.mxu0 0.0
    %151 = vmatprep.subr.mxu0 0.0
    %152 = vmatpush1.msra.mxu0 0.0
    %153 = vmatprep.subr.mxu0 0.0
    %154 = vmatpush1.msra.mxu0 0.0
    %155 = vmatprep.subr.mxu0 0.0
    %156 = vmatpush1.msra.mxu0 0.0
    %157 = vmatprep.subr.mxu0 0.0
    %158 = vmatpush1.msra.mxu0 0.0
    %159 = vmatprep.subr.mxu0 0.0
    %160 = vmatpush1.msra.mxu0 0.0
    %161 = vmatprep.subr.mxu0 0.0
    %162 = vmatpush1.msra.mxu0 0.0
    %163 = vmatprep.subr.mxu0 0.0
    %164 = vmatpush1.msra.mxu0 0.0
    %165 = vmatprep.subr.mxu0 0.0
    %166 = vmatpush1.msra.mxu0 0.0
    %167 = vmatprep.subr.mxu0 0.0
    %168 = vmatpush1.msra.mxu0 0.0
    %169 = vmatprep.subr.mxu0 0.0
    %170 = vmatpush1.msra.mxu0 0.0
    %171 = vmatprep.subr.mxu0 0.0
    %172 = vmatpush1.msra.mxu0 0.0
    %173 = vmatprep.subr.mxu0 0.0
    %174 = vmatpush1.msra.mxu0 0.0
    %175 = vmatprep.subr.mxu0 0.0
    %176 = vmatpush1.msra.mxu0 0.0
    %177 = vmatprep.subr.mxu0 0.0
    %178 = vmatpush1.msra.mxu0 0.0
    %179 = vmatprep.subr.mxu0 0.0
    %180 = vmatpush1.msra.mxu0 0.0
    %181 = vmatprep.subr.mxu0 0.0
    %182 = vmatpush1.msra.mxu0 0.0
    %183 = vmatprep.subr.mxu0 0.0
    %184 = vmatpush1.msra.mxu0 0.0
    %185 = vmatprep.subr.mxu0 0.0
    %186 = vmatpush1.msra.mxu0 0.0
    %187 = vmatprep.subr.mxu0 0.0
    %188 = vmatpush1.msra.mxu0 0.0
    %189 = vmatprep.subr.mxu0 0.0
    %190 = vmatpush1.msra.mxu0 0.0
    %191 = vmatprep.subr.mxu0 0.0
    %192 = vmatpush1.msra.mxu0 0.0
    %193 = vmatprep.subr.mxu0 0.0
    %194 = vmatpush1.msra.mxu0 0.0
    %195 = vmatprep.subr.mxu0 0.0
    %196 = vmatpush1.msra.mxu0 0.0
    %197 = vmatprep.mubr.f32.mxu0 0.0
    %198 = vmatmul.mubr.f32.gmra.mrb[0].mxu0 %v128
    %v199 = vpop.f32.mrb[0].mxu0
    %v200 = vadd.f32 %v126, %v199
    %v201 = vpop.f32.mrb[0].mxu0
    %202 = vmatprep.mubr.f32.mxu0 0.0
    %203 = vmatmul.mubr.f32.gmra.mrb[0].mxu0 %v131
    %v204 = vpop.f32.mrb[0].mxu0
    %v205 = vadd.f32 %v126, %v204
    %v206 = vpop.f32.mrb[0].mxu0
    %207 = vdwg.mxu0
    %v208 = vmul.f32 %v200, 0.35355338
    %v209 = vmul.f32 %v205, 0.35355338
    %212 = vrot.lane.b32.xlu0 %v208, 120
    %v213 = vpop.permute.xlu0 %212
    %214 = vrot.lane.b32.xlu0 %v209, 120
    %v215 = vpop.permute.xlu0 %214
    %218 = vrot.lane.b32.xlu0 %v208, 112
    %v219 = vpop.permute.xlu0 %218
    %220 = vrot.lane.b32.xlu0 %v209, 112
    %v221 = vpop.permute.xlu0 %220
    %224 = vrot.lane.b32.xlu0 %v208, 104
    %v225 = vpop.permute.xlu0 %224
    %226 = vrot.lane.b32.xlu0 %v209, 104
    %v227 = vpop.permute.xlu0 %226
    %v230 = vcombine.low %v208, %v219
    %v231 = vcombine.high %v208, %v219
    %v233 = vunpack.c.l.s4 1983009808
    %v234 = vunpack.c.0.s8 %v233
    %v235 = vlaneseq
    %v236 = vshrl.u32 %v235, 7
    %v237 = vsub.s32 %v234, %v236
    %v238 = vrot.slane %v230, %v237
    %v240 = vunpack.c.l.s4 1983009808
    %v241 = vunpack.c.0.s8 %v240
    %v242 = vlaneseq
    %v243 = vshrl.u32 %v242, 7
    %v244 = vsub.s32 %v241, %v243
    %v245 = vrot.slane %v231, %v244
    %v246 = vcombine.low %v213, %v225
    %v247 = vcombine.high %v213, %v225
    %v249 = vunpack.c.l.s4 1983009808
    %v250 = vunpack.c.0.s8 %v249
    %v251 = vlaneseq
    %v252 = vshrl.u32 %v251, 7
    %v253 = vsub.s32 %v250, %v252
    %v254 = vrot.slane %v246, %v253
    %v256 = vunpack.c.l.s4 1983009808
    %v257 = vunpack.c.0.s8 %v256
    %v258 = vlaneseq
    %v259 = vshrl.u32 %v258, 7
    %v260 = vsub.s32 %v257, %v259
    %v261 = vrot.slane %v247, %v260
    %v262 = vcombine.low %v238, %v254
    %v263 = vcombine.high %v238, %v254
    %v265 = vunpack.c.l.s4 1934713408
    %v266 = vunpack.c.0.s8 %v265
    %v267 = vlaneseq
    %v268 = vshrl.u32 %v267, 7
    %v269 = vsub.s32 %v266, %v268
    %v270 = vrot.slane %v262, %v269
    %v272 = vunpack.c.l.s4 1934713408
    %v273 = vunpack.c.0.s8 %v272
    %v274 = vlaneseq
    %v275 = vshrl.u32 %v274, 7
    %v276 = vsub.s32 %v273, %v275
    %v277 = vrot.slane %v263, %v276
    %v278 = vcombine.low %v245, %v261
    %v279 = vcombine.high %v245, %v261
    %v281 = vunpack.c.l.s4 1934713408
    %v282 = vunpack.c.0.s8 %v281
    %v283 = vlaneseq
    %v284 = vshrl.u32 %v283, 7
    %v285 = vsub.s32 %v282, %v284
    %v286 = vrot.slane %v278, %v285
    %v288 = vunpack.c.l.s4 1934713408
    %v289 = vunpack.c.0.s8 %v288
    %v290 = vlaneseq
    %v291 = vshrl.u32 %v290, 7
    %v292 = vsub.s32 %v289, %v291
    %v293 = vrot.slane %v279, %v292
    %v294 = vcombine.high %v270, 0.0
    %v295 = vcombine.high %v277, 0.0
    %v296 = vcombine.high %v286, 0.0
    %v297 = vcombine.high %v293, 0.0
    %v298 = vcombine.low %v209, %v221
    %v299 = vcombine.high %v209, %v221
    %v301 = vunpack.c.l.s4 1983009808
    %v302 = vunpack.c.0.s8 %v301
    %v303 = vlaneseq
    %v304 = vshrl.u32 %v303, 7
    %v305 = vsub.s32 %v302, %v304
    %v306 = vrot.slane %v298, %v305
    %v308 = vunpack.c.l.s4 1983009808
    %v309 = vunpack.c.0.s8 %v308
    %v310 = vlaneseq
    %v311 = vshrl.u32 %v310, 7
    %v312 = vsub.s32 %v309, %v311
    %v313 = vrot.slane %v299, %v312
    %v314 = vcombine.low %v215, %v227
    %v315 = vcombine.high %v215, %v227
    %v317 = vunpack.c.l.s4 1983009808
    %v318 = vunpack.c.0.s8 %v317
    %v319 = vlaneseq
    %v320 = vshrl.u32 %v319, 7
    %v321 = vsub.s32 %v318, %v320
    %v322 = vrot.slane %v314, %v321
    %v324 = vunpack.c.l.s4 1983009808
    %v325 = vunpack.c.0.s8 %v324
    %v326 = vlaneseq
    %v327 = vshrl.u32 %v326, 7
    %v328 = vsub.s32 %v325, %v327
    %v329 = vrot.slane %v315, %v328
    %v330 = vcombine.low %v306, %v322
    %v331 = vcombine.high %v306, %v322
    %v333 = vunpack.c.l.s4 1934713408
    %v334 = vunpack.c.0.s8 %v333
    %v335 = vlaneseq
    %v336 = vshrl.u32 %v335, 7
    %v337 = vsub.s32 %v334, %v336
    %v338 = vrot.slane %v330, %v337
    %v340 = vunpack.c.l.s4 1934713408
    %v341 = vunpack.c.0.s8 %v340
    %v342 = vlaneseq
    %v343 = vshrl.u32 %v342, 7
    %v344 = vsub.s32 %v341, %v343
    %v345 = vrot.slane %v331, %v344
    %v346 = vcombine.low %v313, %v329
    %v347 = vcombine.high %v313, %v329
    %v349 = vunpack.c.l.s4 1934713408
    %v350 = vunpack.c.0.s8 %v349
    %v351 = vlaneseq
    %v352 = vshrl.u32 %v351, 7
    %v353 = vsub.s32 %v350, %v352
    %v354 = vrot.slane %v346, %v353
    %v356 = vunpack.c.l.s4 1934713408
    %v357 = vunpack.c.0.s8 %v356
    %v358 = vlaneseq
    %v359 = vshrl.u32 %v358, 7
    %v360 = vsub.s32 %v357, %v359
    %v361 = vrot.slane %v347, %v360
    %v362 = vcombine.high %v338, 0.0
    %v363 = vcombine.high %v345, 0.0
    %v364 = vcombine.high %v354, 0.0
    %v365 = vcombine.high %v361, 0.0
    %v366 = vcombine.low %v270, %v277
    %v368 = vunpack.c.l.s4 1983009808
    %v369 = vunpack.c.0.s8 %v368
    %v370 = vlaneseq
    %v371 = vshrl.u32 %v370, 7
    %v372 = vsub.s32 %v369, %v371
    %v373 = vrot.slane %v366, %v372
    %v374 = vcombine.low %v294, %v295
    %v376 = vunpack.c.l.s4 1983009808
    %v377 = vunpack.c.0.s8 %v376
    %v378 = vlaneseq
    %v379 = vshrl.u32 %v378, 7
    %v380 = vsub.s32 %v377, %v379
    %v381 = vrot.slane %v374, %v380
    %v382 = vcombine.low %v286, %v293
    %v384 = vunpack.c.l.s4 1983009808
    %v385 = vunpack.c.0.s8 %v384
    %v386 = vlaneseq
    %v387 = vshrl.u32 %v386, 7
    %v388 = vsub.s32 %v385, %v387
    %v389 = vrot.slane %v382, %v388
    %v390 = vcombine.low %v296, %v297
    %v392 = vunpack.c.l.s4 1983009808
    %v393 = vunpack.c.0.s8 %v392
    %v394 = vlaneseq
    %v395 = vshrl.u32 %v394, 7
    %v396 = vsub.s32 %v393, %v395
    %v397 = vrot.slane %v390, %v396
    %v398 = vcombine.low %v373, %v381
    %v399 = vcombine.high %v373, %v381
    %v401 = vunpack.c.l.s4 1934713408
    %v402 = vunpack.c.0.s8 %v401
    %v403 = vlaneseq
    %v404 = vshrl.u32 %v403, 7
    %v405 = vsub.s32 %v402, %v404
    %v406 = vrot.slane %v398, %v405
    %v408 = vunpack.c.l.s4 1934713408
    %v409 = vunpack.c.0.s8 %v408
    %v410 = vlaneseq
    %v411 = vshrl.u32 %v410, 7
    %v412 = vsub.s32 %v409, %v411
    %v413 = vrot.slane %v399, %v412
    %v414 = vcombine.low %v389, %v397
    %v415 = vcombine.high %v389, %v397
    %v417 = vunpack.c.l.s4 1934713408
    %v418 = vunpack.c.0.s8 %v417
    %v419 = vlaneseq
    %v420 = vshrl.u32 %v419, 7
    %v421 = vsub.s32 %v418, %v420
    %v422 = vrot.slane %v414, %v421
    %v424 = vunpack.c.l.s4 1934713408
    %v425 = vunpack.c.0.s8 %v424
    %v426 = vlaneseq
    %v427 = vshrl.u32 %v426, 7
    %v428 = vsub.s32 %v425, %v427
    %v429 = vrot.slane %v415, %v428
    %v430 = vcombine.low %v406, %v422
    %v431 = vcombine.high %v406, %v422
    %v432 = vcombine.low %v413, %v429
    %v433 = vcombine.high %v413, %v429
    %v434 = vcombine.low %v338, %v345
    %v436 = vunpack.c.l.s4 1983009808
    %v437 = vunpack.c.0.s8 %v436
    %v438 = vlaneseq
    %v439 = vshrl.u32 %v438, 7
    %v440 = vsub.s32 %v437, %v439
    %v441 = vrot.slane %v434, %v440
    %v442 = vcombine.low %v362, %v363
    %v444 = vunpack.c.l.s4 1983009808
    %v445 = vunpack.c.0.s8 %v444
    %v446 = vlaneseq
    %v447 = vshrl.u32 %v446, 7
    %v448 = vsub.s32 %v445, %v447
    %v449 = vrot.slane %v442, %v448
    %v450 = vcombine.low %v354, %v361
    %v452 = vunpack.c.l.s4 1983009808
    %v453 = vunpack.c.0.s8 %v452
    %v454 = vlaneseq
    %v455 = vshrl.u32 %v454, 7
    %v456 = vsub.s32 %v453, %v455
    %v457 = vrot.slane %v450, %v456
    %v458 = vcombine.low %v364, %v365
    %v460 = vunpack.c.l.s4 1983009808
    %v461 = vunpack.c.0.s8 %v460
    %v462 = vlaneseq
    %v463 = vshrl.u32 %v462, 7
    %v464 = vsub.s32 %v461, %v463
    %v465 = vrot.slane %v458, %v464
    %v466 = vcombine.low %v441, %v449
    %v467 = vcombine.high %v441, %v449
    %v469 = vunpack.c.l.s4 1934713408
    %v470 = vunpack.c.0.s8 %v469
    %v471 = vlaneseq
    %v472 = vshrl.u32 %v471, 7
    %v473 = vsub.s32 %v470, %v472
    %v474 = vrot.slane %v466, %v473
    %v476 = vunpack.c.l.s4 1934713408
    %v477 = vunpack.c.0.s8 %v476
    %v478 = vlaneseq
    %v479 = vshrl.u32 %v478, 7
    %v480 = vsub.s32 %v477, %v479
    %v481 = vrot.slane %v467, %v480
    %v482 = vcombine.low %v457, %v465
    %v483 = vcombine.high %v457, %v465
    %v485 = vunpack.c.l.s4 1934713408
    %v486 = vunpack.c.0.s8 %v485
    %v487 = vlaneseq
    %v488 = vshrl.u32 %v487, 7
    %v489 = vsub.s32 %v486, %v488
    %v490 = vrot.slane %v482, %v489
    %v492 = vunpack.c.l.s4 1934713408
    %v493 = vunpack.c.0.s8 %v492
    %v494 = vlaneseq
    %v495 = vshrl.u32 %v494, 7
    %v496 = vsub.s32 %v493, %v495
    %v497 = vrot.slane %v483, %v496
    %v498 = vcombine.low %v474, %v490
    %v499 = vcombine.high %v474, %v490
    %v500 = vcombine.low %v481, %v497
    %v501 = vcombine.high %v481, %v497
    %504 = vrot.lane.b32.xlu0 %v200, 120
    %v505 = vpop.permute.xlu0 %504
    %506 = vrot.lane.b32.xlu0 %v205, 120
    %v507 = vpop.permute.xlu0 %506
    %508 = vrot.lane.b32.xlu0 %v200, 112
    %v509 = vpop.permute.xlu0 %508
    %510 = vrot.lane.b32.xlu0 %v205, 112
    %v511 = vpop.permute.xlu0 %510
    %512 = vrot.lane.b32.xlu0 %v200, 104
    %v513 = vpop.permute.xlu0 %512
    %514 = vrot.lane.b32.xlu0 %v205, 104
    %v515 = vpop.permute.xlu0 %514
    %516 = vrot.lane.b32.xlu0 %v200, 96
    %v517 = vpop.permute.xlu0 %516
    %518 = vrot.lane.b32.xlu0 %v205, 96
    %v519 = vpop.permute.xlu0 %518
    %520 = vrot.lane.b32.xlu0 %v505, 96
    %v521 = vpop.permute.xlu0 %520
    %522 = vrot.lane.b32.xlu0 %v507, 96
    %v523 = vpop.permute.xlu0 %522
    %524 = vrot.lane.b32.xlu0 %v509, 96
    %v525 = vpop.permute.xlu0 %524
    %526 = vrot.lane.b32.xlu0 %v511, 96
    %v527 = vpop.permute.xlu0 %526
    %528 = vrot.lane.b32.xlu0 %v513, 96
    %v529 = vpop.permute.xlu0 %528
    %530 = vrot.lane.b32.xlu0 %v515, 96
    %v531 = vpop.permute.xlu0 %530
    %v540 = vcombine.low %v517, %v525
    %v541 = vcombine.high %v517, %v525
    %v543 = vunpack.c.l.s4 1983009808
    %v544 = vunpack.c.0.s8 %v543
    %v545 = vlaneseq
    %v546 = vshrl.u32 %v545, 7
    %v547 = vsub.s32 %v544, %v546
    %v548 = vrot.slane %v540, %v547
    %v550 = vunpack.c.l.s4 1983009808
    %v551 = vunpack.c.0.s8 %v550
    %v552 = vlaneseq
    %v553 = vshrl.u32 %v552, 7
    %v554 = vsub.s32 %v551, %v553
    %v555 = vrot.slane %v541, %v554
    %v556 = vcombine.low %v521, %v529
    %v557 = vcombine.high %v521, %v529
    %v559 = vunpack.c.l.s4 1983009808
    %v560 = vunpack.c.0.s8 %v559
    %v561 = vlaneseq
    %v562 = vshrl.u32 %v561, 7
    %v563 = vsub.s32 %v560, %v562
    %v564 = vrot.slane %v556, %v563
    %v566 = vunpack.c.l.s4 1983009808
    %v567 = vunpack.c.0.s8 %v566
    %v568 = vlaneseq
    %v569 = vshrl.u32 %v568, 7
    %v570 = vsub.s32 %v567, %v569
    %v571 = vrot.slane %v557, %v570
    %v572 = vcombine.low %v548, %v564
    %v573 = vcombine.high %v548, %v564
    %v575 = vunpack.c.l.s4 1934713408
    %v576 = vunpack.c.0.s8 %v575
    %v577 = vlaneseq
    %v578 = vshrl.u32 %v577, 7
    %v579 = vsub.s32 %v576, %v578
    %v580 = vrot.slane %v572, %v579
    %v582 = vunpack.c.l.s4 1934713408
    %v583 = vunpack.c.0.s8 %v582
    %v584 = vlaneseq
    %v585 = vshrl.u32 %v584, 7
    %v586 = vsub.s32 %v583, %v585
    %v587 = vrot.slane %v573, %v586
    %v588 = vcombine.low %v555, %v571
    %v589 = vcombine.high %v555, %v571
    %v591 = vunpack.c.l.s4 1934713408
    %v592 = vunpack.c.0.s8 %v591
    %v593 = vlaneseq
    %v594 = vshrl.u32 %v593, 7
    %v595 = vsub.s32 %v592, %v594
    %v596 = vrot.slane %v588, %v595
    %v598 = vunpack.c.l.s4 1934713408
    %v599 = vunpack.c.0.s8 %v598
    %v600 = vlaneseq
    %v601 = vshrl.u32 %v600, 7
    %v602 = vsub.s32 %v599, %v601
    %v603 = vrot.slane %v589, %v602
    %v604 = vcombine.high %v580, 0.0
    %v605 = vcombine.high %v587, 0.0
    %v606 = vcombine.high %v596, 0.0
    %v607 = vcombine.high %v603, 0.0
    %v608 = vcombine.low %v519, %v527
    %v609 = vcombine.high %v519, %v527
    %v611 = vunpack.c.l.s4 1983009808
    %v612 = vunpack.c.0.s8 %v611
    %v613 = vlaneseq
    %v614 = vshrl.u32 %v613, 7
    %v615 = vsub.s32 %v612, %v614
    %v616 = vrot.slane %v608, %v615
    %v618 = vunpack.c.l.s4 1983009808
    %v619 = vunpack.c.0.s8 %v618
    %v620 = vlaneseq
    %v621 = vshrl.u32 %v620, 7
    %v622 = vsub.s32 %v619, %v621
    %v623 = vrot.slane %v609, %v622
    %v624 = vcombine.low %v523, %v531
    %v625 = vcombine.high %v523, %v531
    %v627 = vunpack.c.l.s4 1983009808
    %v628 = vunpack.c.0.s8 %v627
    %v629 = vlaneseq
    %v630 = vshrl.u32 %v629, 7
    %v631 = vsub.s32 %v628, %v630
    %v632 = vrot.slane %v624, %v631
    %v634 = vunpack.c.l.s4 1983009808
    %v635 = vunpack.c.0.s8 %v634
    %v636 = vlaneseq
    %v637 = vshrl.u32 %v636, 7
    %v638 = vsub.s32 %v635, %v637
    %v639 = vrot.slane %v625, %v638
    %v640 = vcombine.low %v616, %v632
    %v641 = vcombine.high %v616, %v632
    %v643 = vunpack.c.l.s4 1934713408
    %v644 = vunpack.c.0.s8 %v643
    %v645 = vlaneseq
    %v646 = vshrl.u32 %v645, 7
    %v647 = vsub.s32 %v644, %v646
    %v648 = vrot.slane %v640, %v647
    %v650 = vunpack.c.l.s4 1934713408
    %v651 = vunpack.c.0.s8 %v650
    %v652 = vlaneseq
    %v653 = vshrl.u32 %v652, 7
    %v654 = vsub.s32 %v651, %v653
    %v655 = vrot.slane %v641, %v654
    %v656 = vcombine.low %v623, %v639
    %v657 = vcombine.high %v623, %v639
    %v659 = vunpack.c.l.s4 1934713408
    %v660 = vunpack.c.0.s8 %v659
    %v661 = vlaneseq
    %v662 = vshrl.u32 %v661, 7
    %v663 = vsub.s32 %v660, %v662
    %v664 = vrot.slane %v656, %v663
    %v666 = vunpack.c.l.s4 1934713408
    %v667 = vunpack.c.0.s8 %v666
    %v668 = vlaneseq
    %v669 = vshrl.u32 %v668, 7
    %v670 = vsub.s32 %v667, %v669
    %v671 = vrot.slane %v657, %v670
    %v672 = vcombine.high %v648, 0.0
    %v673 = vcombine.high %v655, 0.0
    %v674 = vcombine.high %v664, 0.0
    %v675 = vcombine.high %v671, 0.0
    %v676 = vcombine.low %v580, %v587
    %v678 = vunpack.c.l.s4 1983009808
    %v679 = vunpack.c.0.s8 %v678
    %v680 = vlaneseq
    %v681 = vshrl.u32 %v680, 7
    %v682 = vsub.s32 %v679, %v681
    %v683 = vrot.slane %v676, %v682
    %v684 = vcombine.low %v604, %v605
    %v686 = vunpack.c.l.s4 1983009808
    %v687 = vunpack.c.0.s8 %v686
    %v688 = vlaneseq
    %v689 = vshrl.u32 %v688, 7
    %v690 = vsub.s32 %v687, %v689
    %v691 = vrot.slane %v684, %v690
    %v692 = vcombine.low %v596, %v603
    %v694 = vunpack.c.l.s4 1983009808
    %v695 = vunpack.c.0.s8 %v694
    %v696 = vlaneseq
    %v697 = vshrl.u32 %v696, 7
    %v698 = vsub.s32 %v695, %v697
    %v699 = vrot.slane %v692, %v698
    %v700 = vcombine.low %v606, %v607
    %v702 = vunpack.c.l.s4 1983009808
    %v703 = vunpack.c.0.s8 %v702
    %v704 = vlaneseq
    %v705 = vshrl.u32 %v704, 7
    %v706 = vsub.s32 %v703, %v705
    %v707 = vrot.slane %v700, %v706
    %v708 = vcombine.low %v683, %v691
    %v709 = vcombine.high %v683, %v691
    %v711 = vunpack.c.l.s4 1934713408
    %v712 = vunpack.c.0.s8 %v711
    %v713 = vlaneseq
    %v714 = vshrl.u32 %v713, 7
    %v715 = vsub.s32 %v712, %v714
    %v716 = vrot.slane %v708, %v715
    %v718 = vunpack.c.l.s4 1934713408
    %v719 = vunpack.c.0.s8 %v718
    %v720 = vlaneseq
    %v721 = vshrl.u32 %v720, 7
    %v722 = vsub.s32 %v719, %v721
    %v723 = vrot.slane %v709, %v722
    %v724 = vcombine.low %v699, %v707
    %v725 = vcombine.high %v699, %v707
    %v727 = vunpack.c.l.s4 1934713408
    %v728 = vunpack.c.0.s8 %v727
    %v729 = vlaneseq
    %v730 = vshrl.u32 %v729, 7
    %v731 = vsub.s32 %v728, %v730
    %v732 = vrot.slane %v724, %v731
    %v734 = vunpack.c.l.s4 1934713408
    %v735 = vunpack.c.0.s8 %v734
    %v736 = vlaneseq
    %v737 = vshrl.u32 %v736, 7
    %v738 = vsub.s32 %v735, %v737
    %v739 = vrot.slane %v725, %v738
    %v740 = vcombine.low %v716, %v732
    %v741 = vcombine.high %v716, %v732
    %v742 = vcombine.low %v723, %v739
    %v743 = vcombine.high %v723, %v739
    %v744 = vcombine.low %v648, %v655
    %v746 = vunpack.c.l.s4 1983009808
    %v747 = vunpack.c.0.s8 %v746
    %v748 = vlaneseq
    %v749 = vshrl.u32 %v748, 7
    %v750 = vsub.s32 %v747, %v749
    %v751 = vrot.slane %v744, %v750
    %v752 = vcombine.low %v672, %v673
    %v754 = vunpack.c.l.s4 1983009808
    %v755 = vunpack.c.0.s8 %v754
    %v756 = vlaneseq
    %v757 = vshrl.u32 %v756, 7
    %v758 = vsub.s32 %v755, %v757
    %v759 = vrot.slane %v752, %v758
    %v760 = vcombine.low %v664, %v671
    %v762 = vunpack.c.l.s4 1983009808
    %v763 = vunpack.c.0.s8 %v762
    %v764 = vlaneseq
    %v765 = vshrl.u32 %v764, 7
    %v766 = vsub.s32 %v763, %v765
    %v767 = vrot.slane %v760, %v766
    %v768 = vcombine.low %v674, %v675
    %v770 = vunpack.c.l.s4 1983009808
    %v771 = vunpack.c.0.s8 %v770
    %v772 = vlaneseq
    %v773 = vshrl.u32 %v772, 7
    %v774 = vsub.s32 %v771, %v773
    %v775 = vrot.slane %v768, %v774
    %v776 = vcombine.low %v751, %v759
    %v777 = vcombine.high %v751, %v759
    %v779 = vunpack.c.l.s4 1934713408
    %v780 = vunpack.c.0.s8 %v779
    %v781 = vlaneseq
    %v782 = vshrl.u32 %v781, 7
    %v783 = vsub.s32 %v780, %v782
    %v784 = vrot.slane %v776, %v783
    %v786 = vunpack.c.l.s4 1934713408
    %v787 = vunpack.c.0.s8 %v786
    %v788 = vlaneseq
    %v789 = vshrl.u32 %v788, 7
    %v790 = vsub.s32 %v787, %v789
    %v791 = vrot.slane %v777, %v790
    %v792 = vcombine.low %v767, %v775
    %v793 = vcombine.high %v767, %v775
    %v795 = vunpack.c.l.s4 1934713408
    %v796 = vunpack.c.0.s8 %v795
    %v797 = vlaneseq
    %v798 = vshrl.u32 %v797, 7
    %v799 = vsub.s32 %v796, %v798
    %v800 = vrot.slane %v792, %v799
    %v802 = vunpack.c.l.s4 1934713408
    %v803 = vunpack.c.0.s8 %v802
    %v804 = vlaneseq
    %v805 = vshrl.u32 %v804, 7
    %v806 = vsub.s32 %v803, %v805
    %v807 = vrot.slane %v793, %v806
    %v808 = vcombine.low %v784, %v800
    %v809 = vcombine.high %v784, %v800
    %v810 = vcombine.low %v791, %v807
    %v811 = vcombine.high %v791, %v807
    %812 = vrot.lane.b32.xlu0 %v200, 64
    %v813 = vpop.permute.xlu0 %812
    %814 = vrot.lane.b32.xlu0 %v205, 64
    %v815 = vpop.permute.xlu0 %814
    %816 = vrot.lane.b32.xlu0 %v505, 64
    %v817 = vpop.permute.xlu0 %816
    %818 = vrot.lane.b32.xlu0 %v507, 64
    %v819 = vpop.permute.xlu0 %818
    %820 = vrot.lane.b32.xlu0 %v509, 64
    %v821 = vpop.permute.xlu0 %820
    %822 = vrot.lane.b32.xlu0 %v511, 64
    %v823 = vpop.permute.xlu0 %822
    %824 = vrot.lane.b32.xlu0 %v513, 64
    %v825 = vpop.permute.xlu0 %824
    %826 = vrot.lane.b32.xlu0 %v515, 64
    %v827 = vpop.permute.xlu0 %826
    %v836 = vcombine.low %v813, %v821
    %v837 = vcombine.high %v813, %v821
    %v839 = vunpack.c.l.s4 1983009808
    %v840 = vunpack.c.0.s8 %v839
    %v841 = vlaneseq
    %v842 = vshrl.u32 %v841, 7
    %v843 = vsub.s32 %v840, %v842
    %v844 = vrot.slane %v836, %v843
    %v846 = vunpack.c.l.s4 1983009808
    %v847 = vunpack.c.0.s8 %v846
    %v848 = vlaneseq
    %v849 = vshrl.u32 %v848, 7
    %v850 = vsub.s32 %v847, %v849
    %v851 = vrot.slane %v837, %v850
    %v852 = vcombine.low %v817, %v825
    %v853 = vcombine.high %v817, %v825
    %v855 = vunpack.c.l.s4 1983009808
    %v856 = vunpack.c.0.s8 %v855
    %v857 = vlaneseq
    %v858 = vshrl.u32 %v857, 7
    %v859 = vsub.s32 %v856, %v858
    %v860 = vrot.slane %v852, %v859
    %v862 = vunpack.c.l.s4 1983009808
    %v863 = vunpack.c.0.s8 %v862
    %v864 = vlaneseq
    %v865 = vshrl.u32 %v864, 7
    %v866 = vsub.s32 %v863, %v865
    %v867 = vrot.slane %v853, %v866
    %v868 = vcombine.low %v844, %v860
    %v869 = vcombine.high %v844, %v860
    %v871 = vunpack.c.l.s4 1934713408
    %v872 = vunpack.c.0.s8 %v871
    %v873 = vlaneseq
    %v874 = vshrl.u32 %v873, 7
    %v875 = vsub.s32 %v872, %v874
    %v876 = vrot.slane %v868, %v875
    %v878 = vunpack.c.l.s4 1934713408
    %v879 = vunpack.c.0.s8 %v878
    %v880 = vlaneseq
    %v881 = vshrl.u32 %v880, 7
    %v882 = vsub.s32 %v879, %v881
    %v883 = vrot.slane %v869, %v882
    %v884 = vcombine.low %v851, %v867
    %v885 = vcombine.high %v851, %v867
    %v887 = vunpack.c.l.s4 1934713408
    %v888 = vunpack.c.0.s8 %v887
    %v889 = vlaneseq
    %v890 = vshrl.u32 %v889, 7
    %v891 = vsub.s32 %v888, %v890
    %v892 = vrot.slane %v884, %v891
    %v894 = vunpack.c.l.s4 1934713408
    %v895 = vunpack.c.0.s8 %v894
    %v896 = vlaneseq
    %v897 = vshrl.u32 %v896, 7
    %v898 = vsub.s32 %v895, %v897
    %v899 = vrot.slane %v885, %v898
    %v900 = vcombine.high %v876, 0.0
    %v901 = vcombine.high %v883, 0.0
    %v902 = vcombine.high %v892, 0.0
    %v903 = vcombine.high %v899, 0.0
    %v904 = vcombine.low %v815, %v823
    %v905 = vcombine.high %v815, %v823
    %v907 = vunpack.c.l.s4 1983009808
    %v908 = vunpack.c.0.s8 %v907
    %v909 = vlaneseq
    %v910 = vshrl.u32 %v909, 7
    %v911 = vsub.s32 %v908, %v910
    %v912 = vrot.slane %v904, %v911
    %v914 = vunpack.c.l.s4 1983009808
    %v915 = vunpack.c.0.s8 %v914
    %v916 = vlaneseq
    %v917 = vshrl.u32 %v916, 7
    %v918 = vsub.s32 %v915, %v917
    %v919 = vrot.slane %v905, %v918
    %v920 = vcombine.low %v819, %v827
    %v921 = vcombine.high %v819, %v827
    %v923 = vunpack.c.l.s4 1983009808
    %v924 = vunpack.c.0.s8 %v923
    %v925 = vlaneseq
    %v926 = vshrl.u32 %v925, 7
    %v927 = vsub.s32 %v924, %v926
    %v928 = vrot.slane %v920, %v927
    %v930 = vunpack.c.l.s4 1983009808
    %v931 = vunpack.c.0.s8 %v930
    %v932 = vlaneseq
    %v933 = vshrl.u32 %v932, 7
    %v934 = vsub.s32 %v931, %v933
    %v935 = vrot.slane %v921, %v934
    %v936 = vcombine.low %v912, %v928
    %v937 = vcombine.high %v912, %v928
    %v939 = vunpack.c.l.s4 1934713408
    %v940 = vunpack.c.0.s8 %v939
    %v941 = vlaneseq
    %v942 = vshrl.u32 %v941, 7
    %v943 = vsub.s32 %v940, %v942
    %v944 = vrot.slane %v936, %v943
    %v946 = vunpack.c.l.s4 1934713408
    %v947 = vunpack.c.0.s8 %v946
    %v948 = vlaneseq
    %v949 = vshrl.u32 %v948, 7
    %v950 = vsub.s32 %v947, %v949
    %v951 = vrot.slane %v937, %v950
    %v952 = vcombine.low %v919, %v935
    %v953 = vcombine.high %v919, %v935
    %v955 = vunpack.c.l.s4 1934713408
    %v956 = vunpack.c.0.s8 %v955
    %v957 = vlaneseq
    %v958 = vshrl.u32 %v957, 7
    %v959 = vsub.s32 %v956, %v958
    %v960 = vrot.slane %v952, %v959
    %v962 = vunpack.c.l.s4 1934713408
    %v963 = vunpack.c.0.s8 %v962
    %v964 = vlaneseq
    %v965 = vshrl.u32 %v964, 7
    %v966 = vsub.s32 %v963, %v965
    %v967 = vrot.slane %v953, %v966
    %v968 = vcombine.high %v944, 0.0
    %v969 = vcombine.high %v951, 0.0
    %v970 = vcombine.high %v960, 0.0
    %v971 = vcombine.high %v967, 0.0
    %v972 = vcombine.low %v876, %v883
    %v974 = vunpack.c.l.s4 1983009808
    %v975 = vunpack.c.0.s8 %v974
    %v976 = vlaneseq
    %v977 = vshrl.u32 %v976, 7
    %v978 = vsub.s32 %v975, %v977
    %v979 = vrot.slane %v972, %v978
    %v980 = vcombine.low %v900, %v901
    %v982 = vunpack.c.l.s4 1983009808
    %v983 = vunpack.c.0.s8 %v982
    %v984 = vlaneseq
    %v985 = vshrl.u32 %v984, 7
    %v986 = vsub.s32 %v983, %v985
    %v987 = vrot.slane %v980, %v986
    %v988 = vcombine.low %v892, %v899
    %v990 = vunpack.c.l.s4 1983009808
    %v991 = vunpack.c.0.s8 %v990
    %v992 = vlaneseq
    %v993 = vshrl.u32 %v992, 7
    %v994 = vsub.s32 %v991, %v993
    %v995 = vrot.slane %v988, %v994
    %v996 = vcombine.low %v902, %v903
    %v998 = vunpack.c.l.s4 1983009808
    %v999 = vunpack.c.0.s8 %v998
    %v1000 = vlaneseq
    %v1001 = vshrl.u32 %v1000, 7
    %v1002 = vsub.s32 %v999, %v1001
    %v1003 = vrot.slane %v996, %v1002
    %v1004 = vcombine.low %v979, %v987
    %v1005 = vcombine.high %v979, %v987
    %v1007 = vunpack.c.l.s4 1934713408
    %v1008 = vunpack.c.0.s8 %v1007
    %v1009 = vlaneseq
    %v1010 = vshrl.u32 %v1009, 7
    %v1011 = vsub.s32 %v1008, %v1010
    %v1012 = vrot.slane %v1004, %v1011
    %v1014 = vunpack.c.l.s4 1934713408
    %v1015 = vunpack.c.0.s8 %v1014
    %v1016 = vlaneseq
    %v1017 = vshrl.u32 %v1016, 7
    %v1018 = vsub.s32 %v1015, %v1017
    %v1019 = vrot.slane %v1005, %v1018
    %v1020 = vcombine.low %v995, %v1003
    %v1021 = vcombine.high %v995, %v1003
    %v1023 = vunpack.c.l.s4 1934713408
    %v1024 = vunpack.c.0.s8 %v1023
    %v1025 = vlaneseq
    %v1026 = vshrl.u32 %v1025, 7
    %v1027 = vsub.s32 %v1024, %v1026
    %v1028 = vrot.slane %v1020, %v1027
    %v1030 = vunpack.c.l.s4 1934713408
    %v1031 = vunpack.c.0.s8 %v1030
    %v1032 = vlaneseq
    %v1033 = vshrl.u32 %v1032, 7
    %v1034 = vsub.s32 %v1031, %v1033
    %v1035 = vrot.slane %v1021, %v1034
    %v1036 = vcombine.low %v1012, %v1028
    %v1037 = vcombine.high %v1012, %v1028
    %v1038 = vcombine.low %v1019, %v1035
    %v1039 = vcombine.high %v1019, %v1035
    %v1040 = vcombine.low %v944, %v951
    %v1042 = vunpack.c.l.s4 1983009808
    %v1043 = vunpack.c.0.s8 %v1042
    %v1044 = vlaneseq
    %v1045 = vshrl.u32 %v1044, 7
    %v1046 = vsub.s32 %v1043, %v1045
    %v1047 = vrot.slane %v1040, %v1046
    %v1048 = vcombine.low %v968, %v969
    %v1050 = vunpack.c.l.s4 1983009808
    %v1051 = vunpack.c.0.s8 %v1050
    %v1052 = vlaneseq
    %v1053 = vshrl.u32 %v1052, 7
    %v1054 = vsub.s32 %v1051, %v1053
    %v1055 = vrot.slane %v1048, %v1054
    %v1056 = vcombine.low %v960, %v967
    %v1058 = vunpack.c.l.s4 1983009808
    %v1059 = vunpack.c.0.s8 %v1058
    %v1060 = vlaneseq
    %v1061 = vshrl.u32 %v1060, 7
    %v1062 = vsub.s32 %v1059, %v1061
    %v1063 = vrot.slane %v1056, %v1062
    %v1064 = vcombine.low %v970, %v971
    %v1066 = vunpack.c.l.s4 1983009808
    %v1067 = vunpack.c.0.s8 %v1066
    %v1068 = vlaneseq
    %v1069 = vshrl.u32 %v1068, 7
    %v1070 = vsub.s32 %v1067, %v1069
    %v1071 = vrot.slane %v1064, %v1070
    %v1072 = vcombine.low %v1047, %v1055
    %v1073 = vcombine.high %v1047, %v1055
    %v1075 = vunpack.c.l.s4 1934713408
    %v1076 = vunpack.c.0.s8 %v1075
    %v1077 = vlaneseq
    %v1078 = vshrl.u32 %v1077, 7
    %v1079 = vsub.s32 %v1076, %v1078
    %v1080 = vrot.slane %v1072, %v1079
    %v1082 = vunpack.c.l.s4 1934713408
    %v1083 = vunpack.c.0.s8 %v1082
    %v1084 = vlaneseq
    %v1085 = vshrl.u32 %v1084, 7
    %v1086 = vsub.s32 %v1083, %v1085
    %v1087 = vrot.slane %v1073, %v1086
    %v1088 = vcombine.low %v1063, %v1071
    %v1089 = vcombine.high %v1063, %v1071
    %v1091 = vunpack.c.l.s4 1934713408
    %v1092 = vunpack.c.0.s8 %v1091
    %v1093 = vlaneseq
    %v1094 = vshrl.u32 %v1093, 7
    %v1095 = vsub.s32 %v1092, %v1094
    %v1096 = vrot.slane %v1088, %v1095
    %v1098 = vunpack.c.l.s4 1934713408
    %v1099 = vunpack.c.0.s8 %v1098
    %v1100 = vlaneseq
    %v1101 = vshrl.u32 %v1100, 7
    %v1102 = vsub.s32 %v1099, %v1101
    %v1103 = vrot.slane %v1089, %v1102
    %v1104 = vcombine.low %v1080, %v1096
    %v1105 = vcombine.high %v1080, %v1096
    %v1106 = vcombine.low %v1087, %v1103
    %v1107 = vcombine.high %v1087, %v1103
    %vm1108 = vcmask 64512
    %v1110 = vsel %vm1108, %v430, 0
    %v1113 = vsel %vm1108, %v740, 0
    %1115 = vmatprep.subr.mxu0 0.0
    %1116 = vmatpush1.xpose.msra.mxu0 %v1113
    %1117 = vmatprep.subr.mxu0 0.0
    %1118 = vmatpush1.xpose.msra.mxu0 0.0
    %1119 = vmatprep.subr.mxu0 0.0
    %1120 = vmatpush1.xpose.msra.mxu0 0.0
    %1121 = vmatprep.subr.mxu0 0.0
    %1122 = vmatpush1.xpose.msra.mxu0 0.0
    %1123 = vmatprep.subr.mxu0 0.0
    %1124 = vmatpush1.xpose.msra.mxu0 0.0
    %1125 = vmatprep.subr.mxu0 0.0
    %1126 = vmatpush1.xpose.msra.mxu0 0.0
    %1127 = vmatprep.subr.mxu0 0.0
    %1128 = vmatpush1.xpose.msra.mxu0 0.0
    %1129 = vmatprep.subr.mxu0 0.0
    %1130 = vmatpush1.xpose.msra.mxu0 0.0
    %1131 = vmatprep.subr.mxu0 0.0
    %1132 = vmatpush1.xpose.msra.mxu0 0.0
    %1133 = vmatprep.subr.mxu0 0.0
    %1134 = vmatpush1.xpose.msra.mxu0 0.0
    %1135 = vmatprep.subr.mxu0 0.0
    %1136 = vmatpush1.xpose.msra.mxu0 0.0
    %1137 = vmatprep.subr.mxu0 0.0
    %1138 = vmatpush1.xpose.msra.mxu0 0.0
    %1139 = vmatprep.subr.mxu0 0.0
    %1140 = vmatpush1.xpose.msra.mxu0 0.0
    %1141 = vmatprep.subr.mxu0 0.0
    %1142 = vmatpush1.xpose.msra.mxu0 0.0
    %1143 = vmatprep.subr.mxu0 0.0
    %1144 = vmatpush1.xpose.msra.mxu0 0.0
    %1145 = vmatprep.subr.mxu0 0.0
    %1146 = vmatpush1.xpose.msra.mxu0 0.0
    %1147 = vmatprep.subr.mxu0 0.0
    %1148 = vmatpush1.xpose.msra.mxu0 0.0
    %1149 = vmatprep.subr.mxu0 0.0
    %1150 = vmatpush1.xpose.msra.mxu0 0.0
    %1151 = vmatprep.subr.mxu0 0.0
    %1152 = vmatpush1.xpose.msra.mxu0 0.0
    %1153 = vmatprep.subr.mxu0 0.0
    %1154 = vmatpush1.xpose.msra.mxu0 0.0
    %1155 = vmatprep.subr.mxu0 0.0
    %1156 = vmatpush1.xpose.msra.mxu0 0.0
    %1157 = vmatprep.subr.mxu0 0.0
    %1158 = vmatpush1.xpose.msra.mxu0 0.0
    %1159 = vmatprep.subr.mxu0 0.0
    %1160 = vmatpush1.xpose.msra.mxu0 0.0
    %1161 = vmatprep.subr.mxu0 0.0
    %1162 = vmatpush1.xpose.msra.mxu0 0.0
    %1163 = vmatprep.subr.mxu0 0.0
    %1164 = vmatpush1.xpose.msra.mxu0 0.0
    %1165 = vmatprep.subr.mxu0 0.0
    %1166 = vmatpush1.xpose.msra.mxu0 0.0
    %1167 = vmatprep.subr.mxu0 0.0
    %1168 = vmatpush1.xpose.msra.mxu0 0.0
    %1169 = vmatprep.subr.mxu0 0.0
    %1170 = vmatpush1.xpose.msra.mxu0 0.0
    %1171 = vmatprep.subr.mxu0 0.0
    %1172 = vmatpush1.xpose.msra.mxu0 0.0
    %1173 = vmatprep.subr.mxu0 0.0
    %1174 = vmatpush1.xpose.msra.mxu0 0.0
    %1175 = vmatprep.subr.mxu0 0.0
    %1176 = vmatpush1.xpose.msra.mxu0 0.0
    %1177 = vmatprep.subr.mxu0 0.0
    %1178 = vmatpush1.xpose.msra.mxu0 0.0
    %1179 = vmatprep.mubr.f32.mxu0 0.0
    %1180 = vmatmul.mubr.f32.gmra.mrb[0].mxu0 %v1110
    %v1181 = vpop.f32.mrb[0].mxu0
    %v1182 = vadd.f32 %v81, %v1181
    %v1183 = vpop.f32.mrb[0].mxu0
    %1184 = vdwg.mxu0
    %v1186 = vsel %vm1108, %v431, 0
    %v1189 = vsel %vm1108, %v741, 0
    %1191 = vmatprep.subr.mxu0 0.0
    %1192 = vmatpush1.xpose.msra.mxu0 %v1189
    %1193 = vmatprep.subr.mxu0 0.0
    %1194 = vmatpush1.xpose.msra.mxu0 0.0
    %1195 = vmatprep.subr.mxu0 0.0
    %1196 = vmatpush1.xpose.msra.mxu0 0.0
    %1197 = vmatprep.subr.mxu0 0.0
    %1198 = vmatpush1.xpose.msra.mxu0 0.0
    %1199 = vmatprep.subr.mxu0 0.0
    %1200 = vmatpush1.xpose.msra.mxu0 0.0
    %1201 = vmatprep.subr.mxu0 0.0
    %1202 = vmatpush1.xpose.msra.mxu0 0.0
    %1203 = vmatprep.subr.mxu0 0.0
    %1204 = vmatpush1.xpose.msra.mxu0 0.0
    %1205 = vmatprep.subr.mxu0 0.0
    %1206 = vmatpush1.xpose.msra.mxu0 0.0
    %1207 = vmatprep.subr.mxu0 0.0
    %1208 = vmatpush1.xpose.msra.mxu0 0.0
    %1209 = vmatprep.subr.mxu0 0.0
    %1210 = vmatpush1.xpose.msra.mxu0 0.0
    %1211 = vmatprep.subr.mxu0 0.0
    %1212 = vmatpush1.xpose.msra.mxu0 0.0
    %1213 = vmatprep.subr.mxu0 0.0
    %1214 = vmatpush1.xpose.msra.mxu0 0.0
    %1215 = vmatprep.subr.mxu0 0.0
    %1216 = vmatpush1.xpose.msra.mxu0 0.0
    %1217 = vmatprep.subr.mxu0 0.0
    %1218 = vmatpush1.xpose.msra.mxu0 0.0
    %1219 = vmatprep.subr.mxu0 0.0
    %1220 = vmatpush1.xpose.msra.mxu0 0.0
    %1221 = vmatprep.subr.mxu0 0.0
    %1222 = vmatpush1.xpose.msra.mxu0 0.0
    %1223 = vmatprep.subr.mxu0 0.0
    %1224 = vmatpush1.xpose.msra.mxu0 0.0
    %1225 = vmatprep.subr.mxu0 0.0
    %1226 = vmatpush1.xpose.msra.mxu0 0.0
    %1227 = vmatprep.subr.mxu0 0.0
    %1228 = vmatpush1.xpose.msra.mxu0 0.0
    %1229 = vmatprep.subr.mxu0 0.0
    %1230 = vmatpush1.xpose.msra.mxu0 0.0
    %1231 = vmatprep.subr.mxu0 0.0
    %1232 = vmatpush1.xpose.msra.mxu0 0.0
    %1233 = vmatprep.subr.mxu0 0.0
    %1234 = vmatpush1.xpose.msra.mxu0 0.0
    %1235 = vmatprep.subr.mxu0 0.0
    %1236 = vmatpush1.xpose.msra.mxu0 0.0
    %1237 = vmatprep.subr.mxu0 0.0
    %1238 = vmatpush1.xpose.msra.mxu0 0.0
    %1239 = vmatprep.subr.mxu0 0.0
    %1240 = vmatpush1.xpose.msra.mxu0 0.0
    %1241 = vmatprep.subr.mxu0 0.0
    %1242 = vmatpush1.xpose.msra.mxu0 0.0
    %1243 = vmatprep.subr.mxu0 0.0
    %1244 = vmatpush1.xpose.msra.mxu0 0.0
    %1245 = vmatprep.subr.mxu0 0.0
    %1246 = vmatpush1.xpose.msra.mxu0 0.0
    %1247 = vmatprep.subr.mxu0 0.0
    %1248 = vmatpush1.xpose.msra.mxu0 0.0
    %1249 = vmatprep.subr.mxu0 0.0
    %1250 = vmatpush1.xpose.msra.mxu0 0.0
    %1251 = vmatprep.subr.mxu0 0.0
    %1252 = vmatpush1.xpose.msra.mxu0 0.0
    %1253 = vmatprep.subr.mxu0 0.0
    %1254 = vmatpush1.xpose.msra.mxu0 0.0
    %1255 = vmatprep.mubr.f32.mxu0 0.0
    %1256 = vmatmul.mubr.f32.gmra.mrb[0].mxu0 %v1186
    %v1257 = vpop.f32.mrb[0].mxu0
    %v1258 = vadd.f32 %v81, %v1257
    %v1259 = vpop.f32.mrb[0].mxu0
    %1260 = vdwg.mxu0
    %v1262 = vsel %vm1108, %v432, 0
    %v1265 = vsel %vm1108, %v742, 0
    %1267 = vmatprep.subr.mxu0 0.0
    %1268 = vmatpush1.xpose.msra.mxu0 %v1265
    %1269 = vmatprep.subr.mxu0 0.0
    %1270 = vmatpush1.xpose.msra.mxu0 0.0
    %1271 = vmatprep.subr.mxu0 0.0
    %1272 = vmatpush1.xpose.msra.mxu0 0.0
    %1273 = vmatprep.subr.mxu0 0.0
    %1274 = vmatpush1.xpose.msra.mxu0 0.0
    %1275 = vmatprep.subr.mxu0 0.0
    %1276 = vmatpush1.xpose.msra.mxu0 0.0
    %1277 = vmatprep.subr.mxu0 0.0
    %1278 = vmatpush1.xpose.msra.mxu0 0.0
    %1279 = vmatprep.subr.mxu0 0.0
    %1280 = vmatpush1.xpose.msra.mxu0 0.0
    %1281 = vmatprep.subr.mxu0 0.0
    %1282 = vmatpush1.xpose.msra.mxu0 0.0
    %1283 = vmatprep.subr.mxu0 0.0
    %1284 = vmatpush1.xpose.msra.mxu0 0.0
    %1285 = vmatprep.subr.mxu0 0.0
    %1286 = vmatpush1.xpose.msra.mxu0 0.0
    %1287 = vmatprep.subr.mxu0 0.0
    %1288 = vmatpush1.xpose.msra.mxu0 0.0
    %1289 = vmatprep.subr.mxu0 0.0
    %1290 = vmatpush1.xpose.msra.mxu0 0.0
    %1291 = vmatprep.subr.mxu0 0.0
    %1292 = vmatpush1.xpose.msra.mxu0 0.0
    %1293 = vmatprep.subr.mxu0 0.0
    %1294 = vmatpush1.xpose.msra.mxu0 0.0
    %1295 = vmatprep.subr.mxu0 0.0
    %1296 = vmatpush1.xpose.msra.mxu0 0.0
    %1297 = vmatprep.subr.mxu0 0.0
    %1298 = vmatpush1.xpose.msra.mxu0 0.0
    %1299 = vmatprep.subr.mxu0 0.0
    %1300 = vmatpush1.xpose.msra.mxu0 0.0
    %1301 = vmatprep.subr.mxu0 0.0
    %1302 = vmatpush1.xpose.msra.mxu0 0.0
    %1303 = vmatprep.subr.mxu0 0.0
    %1304 = vmatpush1.xpose.msra.mxu0 0.0
    %1305 = vmatprep.subr.mxu0 0.0
    %1306 = vmatpush1.xpose.msra.mxu0 0.0
    %1307 = vmatprep.subr.mxu0 0.0
    %1308 = vmatpush1.xpose.msra.mxu0 0.0
    %1309 = vmatprep.subr.mxu0 0.0
    %1310 = vmatpush1.xpose.msra.mxu0 0.0
    %1311 = vmatprep.subr.mxu0 0.0
    %1312 = vmatpush1.xpose.msra.mxu0 0.0
    %1313 = vmatprep.subr.mxu0 0.0
    %1314 = vmatpush1.xpose.msra.mxu0 0.0
    %1315 = vmatprep.subr.mxu0 0.0
    %1316 = vmatpush1.xpose.msra.mxu0 0.0
    %1317 = vmatprep.subr.mxu0 0.0
    %1318 = vmatpush1.xpose.msra.mxu0 0.0
    %1319 = vmatprep.subr.mxu0 0.0
    %1320 = vmatpush1.xpose.msra.mxu0 0.0
    %1321 = vmatprep.subr.mxu0 0.0
    %1322 = vmatpush1.xpose.msra.mxu0 0.0
    %1323 = vmatprep.subr.mxu0 0.0
    %1324 = vmatpush1.xpose.msra.mxu0 0.0
    %1325 = vmatprep.subr.mxu0 0.0
    %1326 = vmatpush1.xpose.msra.mxu0 0.0
    %1327 = vmatprep.subr.mxu0 0.0
    %1328 = vmatpush1.xpose.msra.mxu0 0.0
    %1329 = vmatprep.subr.mxu0 0.0
    %1330 = vmatpush1.xpose.msra.mxu0 0.0
    %1331 = vmatprep.mubr.f32.mxu0 0.0
    %1332 = vmatmul.mubr.f32.gmra.mrb[0].mxu0 %v1262
    %v1333 = vpop.f32.mrb[0].mxu0
    %v1334 = vadd.f32 %v81, %v1333
    %v1335 = vpop.f32.mrb[0].mxu0
    %1336 = vdwg.mxu0
    %v1338 = vsel %vm1108, %v433, 0
    %v1341 = vsel %vm1108, %v743, 0
    %1343 = vmatprep.subr.mxu0 0.0
    %1344 = vmatpush1.xpose.msra.mxu0 %v1341
    %1345 = vmatprep.subr.mxu0 0.0
    %1346 = vmatpush1.xpose.msra.mxu0 0.0
    %1347 = vmatprep.subr.mxu0 0.0
    %1348 = vmatpush1.xpose.msra.mxu0 0.0
    %1349 = vmatprep.subr.mxu0 0.0
    %1350 = vmatpush1.xpose.msra.mxu0 0.0
    %1351 = vmatprep.subr.mxu0 0.0
    %1352 = vmatpush1.xpose.msra.mxu0 0.0
    %1353 = vmatprep.subr.mxu0 0.0
    %1354 = vmatpush1.xpose.msra.mxu0 0.0
    %1355 = vmatprep.subr.mxu0 0.0
    %1356 = vmatpush1.xpose.msra.mxu0 0.0
    %1357 = vmatprep.subr.mxu0 0.0
    %1358 = vmatpush1.xpose.msra.mxu0 0.0
    %1359 = vmatprep.subr.mxu0 0.0
    %1360 = vmatpush1.xpose.msra.mxu0 0.0
    %1361 = vmatprep.subr.mxu0 0.0
    %1362 = vmatpush1.xpose.msra.mxu0 0.0
    %1363 = vmatprep.subr.mxu0 0.0
    %1364 = vmatpush1.xpose.msra.mxu0 0.0
    %1365 = vmatprep.subr.mxu0 0.0
    %1366 = vmatpush1.xpose.msra.mxu0 0.0
    %1367 = vmatprep.subr.mxu0 0.0
    %1368 = vmatpush1.xpose.msra.mxu0 0.0
    %1369 = vmatprep.subr.mxu0 0.0
    %1370 = vmatpush1.xpose.msra.mxu0 0.0
    %1371 = vmatprep.subr.mxu0 0.0
    %1372 = vmatpush1.xpose.msra.mxu0 0.0
    %1373 = vmatprep.subr.mxu0 0.0
    %1374 = vmatpush1.xpose.msra.mxu0 0.0
    %1375 = vmatprep.subr.mxu0 0.0
    %1376 = vmatpush1.xpose.msra.mxu0 0.0
    %1377 = vmatprep.subr.mxu0 0.0
    %1378 = vmatpush1.xpose.msra.mxu0 0.0
    %1379 = vmatprep.subr.mxu0 0.0
    %1380 = vmatpush1.xpose.msra.mxu0 0.0
    %1381 = vmatprep.subr.mxu0 0.0
    %1382 = vmatpush1.xpose.msra.mxu0 0.0
    %1383 = vmatprep.subr.mxu0 0.0
    %1384 = vmatpush1.xpose.msra.mxu0 0.0
    %1385 = vmatprep.subr.mxu0 0.0
    %1386 = vmatpush1.xpose.msra.mxu0 0.0
    %1387 = vmatprep.subr.mxu0 0.0
    %1388 = vmatpush1.xpose.msra.mxu0 0.0
    %1389 = vmatprep.subr.mxu0 0.0
    %1390 = vmatpush1.xpose.msra.mxu0 0.0
    %1391 = vmatprep.subr.mxu0 0.0
    %1392 = vmatpush1.xpose.msra.mxu0 0.0
    %1393 = vmatprep.subr.mxu0 0.0
    %1394 = vmatpush1.xpose.msra.mxu0 0.0
    %1395 = vmatprep.subr.mxu0 0.0
    %1396 = vmatpush1.xpose.msra.mxu0 0.0
    %1397 = vmatprep.subr.mxu0 0.0
    %1398 = vmatpush1.xpose.msra.mxu0 0.0
    %1399 = vmatprep.subr.mxu0 0.0
    %1400 = vmatpush1.xpose.msra.mxu0 0.0
    %1401 = vmatprep.subr.mxu0 0.0
    %1402 = vmatpush1.xpose.msra.mxu0 0.0
    %1403 = vmatprep.subr.mxu0 0.0
    %1404 = vmatpush1.xpose.msra.mxu0 0.0
    %1405 = vmatprep.subr.mxu0 0.0
    %1406 = vmatpush1.xpose.msra.mxu0 0.0
    %1407 = vmatprep.mubr.f32.mxu0 0.0
    %1408 = vmatmul.mubr.f32.gmra.mrb[0].mxu0 %v1338
    %v1409 = vpop.f32.mrb[0].mxu0
    %v1410 = vadd.f32 %v81, %v1409
    %v1411 = vpop.f32.mrb[0].mxu0
    %1412 = vdwg.mxu0
    %v1414 = vsel %vm1108, %v498, 0
    %v1417 = vsel %vm1108, %v808, 0
    %1419 = vmatprep.subr.mxu0 0.0
    %1420 = vmatpush1.xpose.msra.mxu0 %v1417
    %1421 = vmatprep.subr.mxu0 0.0
    %1422 = vmatpush1.xpose.msra.mxu0 0.0
    %1423 = vmatprep.subr.mxu0 0.0
    %1424 = vmatpush1.xpose.msra.mxu0 0.0
    %1425 = vmatprep.subr.mxu0 0.0
    %1426 = vmatpush1.xpose.msra.mxu0 0.0
    %1427 = vmatprep.subr.mxu0 0.0
    %1428 = vmatpush1.xpose.msra.mxu0 0.0
    %1429 = vmatprep.subr.mxu0 0.0
    %1430 = vmatpush1.xpose.msra.mxu0 0.0
    %1431 = vmatprep.subr.mxu0 0.0
    %1432 = vmatpush1.xpose.msra.mxu0 0.0
    %1433 = vmatprep.subr.mxu0 0.0
    %1434 = vmatpush1.xpose.msra.mxu0 0.0
    %1435 = vmatprep.subr.mxu0 0.0
    %1436 = vmatpush1.xpose.msra.mxu0 0.0
    %1437 = vmatprep.subr.mxu0 0.0
    %1438 = vmatpush1.xpose.msra.mxu0 0.0
    %1439 = vmatprep.subr.mxu0 0.0
    %1440 = vmatpush1.xpose.msra.mxu0 0.0
    %1441 = vmatprep.subr.mxu0 0.0
    %1442 = vmatpush1.xpose.msra.mxu0 0.0
    %1443 = vmatprep.subr.mxu0 0.0
    %1444 = vmatpush1.xpose.msra.mxu0 0.0
    %1445 = vmatprep.subr.mxu0 0.0
    %1446 = vmatpush1.xpose.msra.mxu0 0.0
    %1447 = vmatprep.subr.mxu0 0.0
    %1448 = vmatpush1.xpose.msra.mxu0 0.0
    %1449 = vmatprep.subr.mxu0 0.0
    %1450 = vmatpush1.xpose.msra.mxu0 0.0
    %1451 = vmatprep.subr.mxu0 0.0
    %1452 = vmatpush1.xpose.msra.mxu0 0.0
    %1453 = vmatprep.subr.mxu0 0.0
    %1454 = vmatpush1.xpose.msra.mxu0 0.0
    %1455 = vmatprep.subr.mxu0 0.0
    %1456 = vmatpush1.xpose.msra.mxu0 0.0
    %1457 = vmatprep.subr.mxu0 0.0
    %1458 = vmatpush1.xpose.msra.mxu0 0.0
    %1459 = vmatprep.subr.mxu0 0.0
    %1460 = vmatpush1.xpose.msra.mxu0 0.0
    %1461 = vmatprep.subr.mxu0 0.0
    %1462 = vmatpush1.xpose.msra.mxu0 0.0
    %1463 = vmatprep.subr.mxu0 0.0
    %1464 = vmatpush1.xpose.msra.mxu0 0.0
    %1465 = vmatprep.subr.mxu0 0.0
    %1466 = vmatpush1.xpose.msra.mxu0 0.0
    %1467 = vmatprep.subr.mxu0 0.0
    %1468 = vmatpush1.xpose.msra.mxu0 0.0
    %1469 = vmatprep.subr.mxu0 0.0
    %1470 = vmatpush1.xpose.msra.mxu0 0.0
    %1471 = vmatprep.subr.mxu0 0.0
    %1472 = vmatpush1.xpose.msra.mxu0 0.0
    %1473 = vmatprep.subr.mxu0 0.0
    %1474 = vmatpush1.xpose.msra.mxu0 0.0
    %1475 = vmatprep.subr.mxu0 0.0
    %1476 = vmatpush1.xpose.msra.mxu0 0.0
    %1477 = vmatprep.subr.mxu0 0.0
    %1478 = vmatpush1.xpose.msra.mxu0 0.0
    %1479 = vmatprep.subr.mxu0 0.0
    %1480 = vmatpush1.xpose.msra.mxu0 0.0
    %1481 = vmatprep.subr.mxu0 0.0
    %1482 = vmatpush1.xpose.msra.mxu0 0.0
    %1483 = vmatprep.mubr.f32.mxu0 0.0
    %1484 = vmatmul.mubr.f32.gmra.mrb[0].mxu0 %v1414
    %v1485 = vpop.f32.mrb[0].mxu0
    %v1486 = vadd.f32 %v82, %v1485
    %v1487 = vpop.f32.mrb[0].mxu0
    %1488 = vdwg.mxu0
    %v1490 = vsel %vm1108, %v499, 0
    %v1493 = vsel %vm1108, %v809, 0
    %1495 = vmatprep.subr.mxu0 0.0
    %1496 = vmatpush1.xpose.msra.mxu0 %v1493
    %1497 = vmatprep.subr.mxu0 0.0
    %1498 = vmatpush1.xpose.msra.mxu0 0.0
    %1499 = vmatprep.subr.mxu0 0.0
    %1500 = vmatpush1.xpose.msra.mxu0 0.0
    %1501 = vmatprep.subr.mxu0 0.0
    %1502 = vmatpush1.xpose.msra.mxu0 0.0
    %1503 = vmatprep.subr.mxu0 0.0
    %1504 = vmatpush1.xpose.msra.mxu0 0.0
    %1505 = vmatprep.subr.mxu0 0.0
    %1506 = vmatpush1.xpose.msra.mxu0 0.0
    %1507 = vmatprep.subr.mxu0 0.0
    %1508 = vmatpush1.xpose.msra.mxu0 0.0
    %1509 = vmatprep.subr.mxu0 0.0
    %1510 = vmatpush1.xpose.msra.mxu0 0.0
    %1511 = vmatprep.subr.mxu0 0.0
    %1512 = vmatpush1.xpose.msra.mxu0 0.0
    %1513 = vmatprep.subr.mxu0 0.0
    %1514 = vmatpush1.xpose.msra.mxu0 0.0
    %1515 = vmatprep.subr.mxu0 0.0
    %1516 = vmatpush1.xpose.msra.mxu0 0.0
    %1517 = vmatprep.subr.mxu0 0.0
    %1518 = vmatpush1.xpose.msra.mxu0 0.0
    %1519 = vmatprep.subr.mxu0 0.0
    %1520 = vmatpush1.xpose.msra.mxu0 0.0
    %1521 = vmatprep.subr.mxu0 0.0
    %1522 = vmatpush1.xpose.msra.mxu0 0.0
    %1523 = vmatprep.subr.mxu0 0.0
    %1524 = vmatpush1.xpose.msra.mxu0 0.0
    %1525 = vmatprep.subr.mxu0 0.0
    %1526 = vmatpush1.xpose.msra.mxu0 0.0
    %1527 = vmatprep.subr.mxu0 0.0
    %1528 = vmatpush1.xpose.msra.mxu0 0.0
    %1529 = vmatprep.subr.mxu0 0.0
    %1530 = vmatpush1.xpose.msra.mxu0 0.0
    %1531 = vmatprep.subr.mxu0 0.0
    %1532 = vmatpush1.xpose.msra.mxu0 0.0
    %1533 = vmatprep.subr.mxu0 0.0
    %1534 = vmatpush1.xpose.msra.mxu0 0.0
    %1535 = vmatprep.subr.mxu0 0.0
    %1536 = vmatpush1.xpose.msra.mxu0 0.0
    %1537 = vmatprep.subr.mxu0 0.0
    %1538 = vmatpush1.xpose.msra.mxu0 0.0
    %1539 = vmatprep.subr.mxu0 0.0
    %1540 = vmatpush1.xpose.msra.mxu0 0.0
    %1541 = vmatprep.subr.mxu0 0.0
    %1542 = vmatpush1.xpose.msra.mxu0 0.0
    %1543 = vmatprep.subr.mxu0 0.0
    %1544 = vmatpush1.xpose.msra.mxu0 0.0
    %1545 = vmatprep.subr.mxu0 0.0
    %1546 = vmatpush1.xpose.msra.mxu0 0.0
    %1547 = vmatprep.subr.mxu0 0.0
    %1548 = vmatpush1.xpose.msra.mxu0 0.0
    %1549 = vmatprep.subr.mxu0 0.0
    %1550 = vmatpush1.xpose.msra.mxu0 0.0
    %1551 = vmatprep.subr.mxu0 0.0
    %1552 = vmatpush1.xpose.msra.mxu0 0.0
    %1553 = vmatprep.subr.mxu0 0.0
    %1554 = vmatpush1.xpose.msra.mxu0 0.0
    %1555 = vmatprep.subr.mxu0 0.0
    %1556 = vmatpush1.xpose.msra.mxu0 0.0
    %1557 = vmatprep.subr.mxu0 0.0
    %1558 = vmatpush1.xpose.msra.mxu0 0.0
    %1559 = vmatprep.mubr.f32.mxu0 0.0
    %1560 = vmatmul.mubr.f32.gmra.mrb[0].mxu0 %v1490
    %v1561 = vpop.f32.mrb[0].mxu0
    %v1562 = vadd.f32 %v82, %v1561
    %v1563 = vpop.f32.mrb[0].mxu0
    %1564 = vdwg.mxu0
    %v1566 = vsel %vm1108, %v500, 0
    %v1569 = vsel %vm1108, %v810, 0
    %1571 = vmatprep.subr.mxu0 0.0
    %1572 = vmatpush1.xpose.msra.mxu0 %v1569
    %1573 = vmatprep.subr.mxu0 0.0
    %1574 = vmatpush1.xpose.msra.mxu0 0.0
    %1575 = vmatprep.subr.mxu0 0.0
    %1576 = vmatpush1.xpose.msra.mxu0 0.0
    %1577 = vmatprep.subr.mxu0 0.0
    %1578 = vmatpush1.xpose.msra.mxu0 0.0
    %1579 = vmatprep.subr.mxu0 0.0
    %1580 = vmatpush1.xpose.msra.mxu0 0.0
    %1581 = vmatprep.subr.mxu0 0.0
    %1582 = vmatpush1.xpose.msra.mxu0 0.0
    %1583 = vmatprep.subr.mxu0 0.0
    %1584 = vmatpush1.xpose.msra.mxu0 0.0
    %1585 = vmatprep.subr.mxu0 0.0
    %1586 = vmatpush1.xpose.msra.mxu0 0.0
    %1587 = vmatprep.subr.mxu0 0.0
    %1588 = vmatpush1.xpose.msra.mxu0 0.0
    %1589 = vmatprep.subr.mxu0 0.0
    %1590 = vmatpush1.xpose.msra.mxu0 0.0
    %1591 = vmatprep.subr.mxu0 0.0
    %1592 = vmatpush1.xpose.msra.mxu0 0.0
    %1593 = vmatprep.subr.mxu0 0.0
    %1594 = vmatpush1.xpose.msra.mxu0 0.0
    %1595 = vmatprep.subr.mxu0 0.0
    %1596 = vmatpush1.xpose.msra.mxu0 0.0
    %1597 = vmatprep.subr.mxu0 0.0
    %1598 = vmatpush1.xpose.msra.mxu0 0.0
    %1599 = vmatprep.subr.mxu0 0.0
    %1600 = vmatpush1.xpose.msra.mxu0 0.0
    %1601 = vmatprep.subr.mxu0 0.0
    %1602 = vmatpush1.xpose.msra.mxu0 0.0
    %1603 = vmatprep.subr.mxu0 0.0
    %1604 = vmatpush1.xpose.msra.mxu0 0.0
    %1605 = vmatprep.subr.mxu0 0.0
    %1606 = vmatpush1.xpose.msra.mxu0 0.0
    %1607 = vmatprep.subr.mxu0 0.0
    %1608 = vmatpush1.xpose.msra.mxu0 0.0
    %1609 = vmatprep.subr.mxu0 0.0
    %1610 = vmatpush1.xpose.msra.mxu0 0.0
    %1611 = vmatprep.subr.mxu0 0.0
    %1612 = vmatpush1.xpose.msra.mxu0 0.0
    %1613 = vmatprep.subr.mxu0 0.0
    %1614 = vmatpush1.xpose.msra.mxu0 0.0
    %1615 = vmatprep.subr.mxu0 0.0
    %1616 = vmatpush1.xpose.msra.mxu0 0.0
    %1617 = vmatprep.subr.mxu0 0.0
    %1618 = vmatpush1.xpose.msra.mxu0 0.0
    %1619 = vmatprep.subr.mxu0 0.0
    %1620 = vmatpush1.xpose.msra.mxu0 0.0
    %1621 = vmatprep.subr.mxu0 0.0
    %1622 = vmatpush1.xpose.msra.mxu0 0.0
    %1623 = vmatprep.subr.mxu0 0.0
    %1624 = vmatpush1.xpose.msra.mxu0 0.0
    %1625 = vmatprep.subr.mxu0 0.0
    %1626 = vmatpush1.xpose.msra.mxu0 0.0
    %1627 = vmatprep.subr.mxu0 0.0
    %1628 = vmatpush1.xpose.msra.mxu0 0.0
    %1629 = vmatprep.subr.mxu0 0.0
    %1630 = vmatpush1.xpose.msra.mxu0 0.0
    %1631 = vmatprep.subr.mxu0 0.0
    %1632 = vmatpush1.xpose.msra.mxu0 0.0
    %1633 = vmatprep.subr.mxu0 0.0
    %1634 = vmatpush1.xpose.msra.mxu0 0.0
    %1635 = vmatprep.mubr.f32.mxu0 0.0
    %1636 = vmatmul.mubr.f32.gmra.mrb[0].mxu0 %v1566
    %v1637 = vpop.f32.mrb[0].mxu0
    %v1638 = vadd.f32 %v82, %v1637
    %v1639 = vpop.f32.mrb[0].mxu0
    %1640 = vdwg.mxu0
    %v1642 = vsel %vm1108, %v501, 0
    %v1645 = vsel %vm1108, %v811, 0
    %1647 = vmatprep.subr.mxu0 0.0
    %1648 = vmatpush1.xpose.msra.mxu0 %v1645
    %1649 = vmatprep.subr.mxu0 0.0
    %1650 = vmatpush1.xpose.msra.mxu0 0.0
    %1651 = vmatprep.subr.mxu0 0.0
    %1652 = vmatpush1.xpose.msra.mxu0 0.0
    %1653 = vmatprep.subr.mxu0 0.0
    %1654 = vmatpush1.xpose.msra.mxu0 0.0
    %1655 = vmatprep.subr.mxu0 0.0
    %1656 = vmatpush1.xpose.msra.mxu0 0.0
    %1657 = vmatprep.subr.mxu0 0.0
    %1658 = vmatpush1.xpose.msra.mxu0 0.0
    %1659 = vmatprep.subr.mxu0 0.0
    %1660 = vmatpush1.xpose.msra.mxu0 0.0
    %1661 = vmatprep.subr.mxu0 0.0
    %1662 = vmatpush1.xpose.msra.mxu0 0.0
    %1663 = vmatprep.subr.mxu0 0.0
    %1664 = vmatpush1.xpose.msra.mxu0 0.0
    %1665 = vmatprep.subr.mxu0 0.0
    %1666 = vmatpush1.xpose.msra.mxu0 0.0
    %1667 = vmatprep.subr.mxu0 0.0
    %1668 = vmatpush1.xpose.msra.mxu0 0.0
    %1669 = vmatprep.subr.mxu0 0.0
    %1670 = vmatpush1.xpose.msra.mxu0 0.0
    %1671 = vmatprep.subr.mxu0 0.0
    %1672 = vmatpush1.xpose.msra.mxu0 0.0
    %1673 = vmatprep.subr.mxu0 0.0
    %1674 = vmatpush1.xpose.msra.mxu0 0.0
    %1675 = vmatprep.subr.mxu0 0.0
    %1676 = vmatpush1.xpose.msra.mxu0 0.0
    %1677 = vmatprep.subr.mxu0 0.0
    %1678 = vmatpush1.xpose.msra.mxu0 0.0
    %1679 = vmatprep.subr.mxu0 0.0
    %1680 = vmatpush1.xpose.msra.mxu0 0.0
    %1681 = vmatprep.subr.mxu0 0.0
    %1682 = vmatpush1.xpose.msra.mxu0 0.0
    %1683 = vmatprep.subr.mxu0 0.0
    %1684 = vmatpush1.xpose.msra.mxu0 0.0
    %1685 = vmatprep.subr.mxu0 0.0
    %1686 = vmatpush1.xpose.msra.mxu0 0.0
    %1687 = vmatprep.subr.mxu0 0.0
    %1688 = vmatpush1.xpose.msra.mxu0 0.0
    %1689 = vmatprep.subr.mxu0 0.0
    %1690 = vmatpush1.xpose.msra.mxu0 0.0
    %1691 = vmatprep.subr.mxu0 0.0
    %1692 = vmatpush1.xpose.msra.mxu0 0.0
    %1693 = vmatprep.subr.mxu0 0.0
    %1694 = vmatpush1.xpose.msra.mxu0 0.0
    %1695 = vmatprep.subr.mxu0 0.0
    %1696 = vmatpush1.xpose.msra.mxu0 0.0
    %1697 = vmatprep.subr.mxu0 0.0
    %1698 = vmatpush1.xpose.msra.mxu0 0.0
    %1699 = vmatprep.subr.mxu0 0.0
    %1700 = vmatpush1.xpose.msra.mxu0 0.0
    %1701 = vmatprep.subr.mxu0 0.0
    %1702 = vmatpush1.xpose.msra.mxu0 0.0
    %1703 = vmatprep.subr.mxu0 0.0
    %1704 = vmatpush1.xpose.msra.mxu0 0.0
    %1705 = vmatprep.subr.mxu0 0.0
    %1706 = vmatpush1.xpose.msra.mxu0 0.0
    %1707 = vmatprep.subr.mxu0 0.0
    %1708 = vmatpush1.xpose.msra.mxu0 0.0
    %1709 = vmatprep.subr.mxu0 0.0
    %1710 = vmatpush1.xpose.msra.mxu0 0.0
    %1711 = vmatprep.mubr.f32.mxu0 0.0
    %1712 = vmatmul.mubr.f32.gmra.mrb[0].mxu0 %v1642
    %v1713 = vpop.f32.mrb[0].mxu0
    %v1714 = vadd.f32 %v82, %v1713
    %v1715 = vpop.f32.mrb[0].mxu0
    %1716 = vdwg.mxu0
    %v1717 = vsel %vm1108, %v1182, -inf
    %1718 = vmax.xlane.f32.xlu0 %v1717
    %v1719 = vpop.xlane.xlu0 %1718
    %v1720 = vsel %vm1108, %v1258, -inf
    %1721 = vmax.xlane.f32.xlu0 %v1720
    %v1722 = vpop.xlane.xlu0 %1721
    %v1723 = vsel %vm1108, %v1334, -inf
    %1724 = vmax.xlane.f32.xlu0 %v1723
    %v1725 = vpop.xlane.xlu0 %1724
    %v1726 = vsel %vm1108, %v1410, -inf
    %1727 = vmax.xlane.f32.xlu0 %v1726
    %v1728 = vpop.xlane.xlu0 %1727
    %v1729 = vsel %vm1108, %v1486, -inf
    %1730 = vmax.xlane.f32.xlu0 %v1729
    %v1731 = vpop.xlane.xlu0 %1730
    %v1732 = vsel %vm1108, %v1562, -inf
    %1733 = vmax.xlane.f32.xlu0 %v1732
    %v1734 = vpop.xlane.xlu0 %1733
    %v1735 = vsel %vm1108, %v1638, -inf
    %1736 = vmax.xlane.f32.xlu0 %v1735
    %v1737 = vpop.xlane.xlu0 %1736
    %v1738 = vsel %vm1108, %v1714, -inf
    %1739 = vmax.xlane.f32.xlu0 %v1738
    %v1740 = vpop.xlane.xlu0 %1739
    %v1741 = vsub.f32 %v1182, %v1719
    %v1742 = vsub.f32 %v1258, %v1722
    %v1743 = vsub.f32 %v1334, %v1725
    %v1744 = vsub.f32 %v1410, %v1728
    %v1745 = vsub.f32 %v1486, %v1731
    %v1746 = vsub.f32 %v1562, %v1734
    %v1747 = vsub.f32 %v1638, %v1737
    %v1748 = vsub.f32 %v1714, %v1740
    %v1749 = vmul.f32 %v1741, 1.442695
    %v1750 = vpow.pop %v1749
    %v1751 = vmul.f32 %v1742, 1.442695
    %v1752 = vpow.pop %v1751
    %v1753 = vmul.f32 %v1743, 1.442695
    %v1754 = vpow.pop %v1753
    %v1755 = vmul.f32 %v1744, 1.442695
    %v1756 = vpow.pop %v1755
    %v1757 = vmul.f32 %v1745, 1.442695
    %v1758 = vpow.pop %v1757
    %v1759 = vmul.f32 %v1746, 1.442695
    %v1760 = vpow.pop %v1759
    %v1761 = vmul.f32 %v1747, 1.442695
    %v1762 = vpow.pop %v1761
    %v1763 = vmul.f32 %v1748, 1.442695
    %v1764 = vpow.pop %v1763
    %v1765 = vsel %vm1108, %v1750, 0.0
    %1766 = vadd.xlane.f32.xlu0 %v1765
    %v1767 = vpop.xlane.xlu0 %1766
    %v1768 = vsel %vm1108, %v1752, 0.0
    %1769 = vadd.xlane.f32.xlu0 %v1768
    %v1770 = vpop.xlane.xlu0 %1769
    %v1771 = vsel %vm1108, %v1754, 0.0
    %1772 = vadd.xlane.f32.xlu0 %v1771
    %v1773 = vpop.xlane.xlu0 %1772
    %v1774 = vsel %vm1108, %v1756, 0.0
    %1775 = vadd.xlane.f32.xlu0 %v1774
    %v1776 = vpop.xlane.xlu0 %1775
    %v1777 = vsel %vm1108, %v1758, 0.0
    %1778 = vadd.xlane.f32.xlu0 %v1777
    %v1779 = vpop.xlane.xlu0 %1778
    %v1780 = vsel %vm1108, %v1760, 0.0
    %1781 = vadd.xlane.f32.xlu0 %v1780
    %v1782 = vpop.xlane.xlu0 %1781
    %v1783 = vsel %vm1108, %v1762, 0.0
    %1784 = vadd.xlane.f32.xlu0 %v1783
    %v1785 = vpop.xlane.xlu0 %1784
    %v1786 = vsel %vm1108, %v1764, 0.0
    %1787 = vadd.xlane.f32.xlu0 %v1786
    %v1788 = vpop.xlane.xlu0 %1787
    %v1789 = vrcp.pop %v1767
    %v1790 = vmul.f32 %v1750, %v1789
    %v1791 = vrcp.pop %v1770
    %v1792 = vmul.f32 %v1752, %v1791
    %v1793 = vrcp.pop %v1773
    %v1794 = vmul.f32 %v1754, %v1793
    %v1795 = vrcp.pop %v1776
    %v1796 = vmul.f32 %v1756, %v1795
    %v1797 = vrcp.pop %v1779
    %v1798 = vmul.f32 %v1758, %v1797
    %v1799 = vrcp.pop %v1782
    %v1800 = vmul.f32 %v1760, %v1799
    %v1801 = vrcp.pop %v1785
    %v1802 = vmul.f32 %v1762, %v1801
    %v1803 = vrcp.pop %v1788
    %v1804 = vmul.f32 %v1764, %v1803
    %v1806 = vsel %vm1108, %v1790, 0
    %1808 = vmatprep.subr.mxu0 0.0
    %1809 = vmatpush1.msra.mxu0 %v1036
    %1810 = vmatprep.subr.mxu0 0.0
    %1811 = vmatpush1.msra.mxu0 0.0
    %1812 = vmatprep.subr.mxu0 0.0
    %1813 = vmatpush1.msra.mxu0 0.0
    %1814 = vmatprep.subr.mxu0 0.0
    %1815 = vmatpush1.msra.mxu0 0.0
    %1816 = vmatprep.subr.mxu0 0.0
    %1817 = vmatpush1.msra.mxu0 0.0
    %1818 = vmatprep.subr.mxu0 0.0
    %1819 = vmatpush1.msra.mxu0 0.0
    %1820 = vmatprep.subr.mxu0 0.0
    %1821 = vmatpush1.msra.mxu0 0.0
    %1822 = vmatprep.subr.mxu0 0.0
    %1823 = vmatpush1.msra.mxu0 0.0
    %1824 = vmatprep.subr.mxu0 0.0
    %1825 = vmatpush1.msra.mxu0 0.0
    %1826 = vmatprep.subr.mxu0 0.0
    %1827 = vmatpush1.msra.mxu0 0.0
    %1828 = vmatprep.subr.mxu0 0.0
    %1829 = vmatpush1.msra.mxu0 0.0
    %1830 = vmatprep.subr.mxu0 0.0
    %1831 = vmatpush1.msra.mxu0 0.0
    %1832 = vmatprep.subr.mxu0 0.0
    %1833 = vmatpush1.msra.mxu0 0.0
    %1834 = vmatprep.subr.mxu0 0.0
    %1835 = vmatpush1.msra.mxu0 0.0
    %1836 = vmatprep.subr.mxu0 0.0
    %1837 = vmatpush1.msra.mxu0 0.0
    %1838 = vmatprep.subr.mxu0 0.0
    %1839 = vmatpush1.msra.mxu0 0.0
    %1840 = vmatprep.subr.mxu0 0.0
    %1841 = vmatpush1.msra.mxu0 0.0
    %1842 = vmatprep.subr.mxu0 0.0
    %1843 = vmatpush1.msra.mxu0 0.0
    %1844 = vmatprep.subr.mxu0 0.0
    %1845 = vmatpush1.msra.mxu0 0.0
    %1846 = vmatprep.subr.mxu0 0.0
    %1847 = vmatpush1.msra.mxu0 0.0
    %1848 = vmatprep.subr.mxu0 0.0
    %1849 = vmatpush1.msra.mxu0 0.0
    %1850 = vmatprep.subr.mxu0 0.0
    %1851 = vmatpush1.msra.mxu0 0.0
    %1852 = vmatprep.subr.mxu0 0.0
    %1853 = vmatpush1.msra.mxu0 0.0
    %1854 = vmatprep.subr.mxu0 0.0
    %1855 = vmatpush1.msra.mxu0 0.0
    %1856 = vmatprep.subr.mxu0 0.0
    %1857 = vmatpush1.msra.mxu0 0.0
    %1858 = vmatprep.subr.mxu0 0.0
    %1859 = vmatpush1.msra.mxu0 0.0
    %1860 = vmatprep.subr.mxu0 0.0
    %1861 = vmatpush1.msra.mxu0 0.0
    %1862 = vmatprep.subr.mxu0 0.0
    %1863 = vmatpush1.msra.mxu0 0.0
    %1864 = vmatprep.subr.mxu0 0.0
    %1865 = vmatpush1.msra.mxu0 0.0
    %1866 = vmatprep.subr.mxu0 0.0
    %1867 = vmatpush1.msra.mxu0 0.0
    %1868 = vmatprep.subr.mxu0 0.0
    %1869 = vmatpush1.msra.mxu0 0.0
    %1870 = vmatprep.subr.mxu0 0.0
    %1871 = vmatpush1.msra.mxu0 0.0
    %1872 = vmatprep.mubr.f32.mxu0 0.0
    %1873 = vmatmul.mubr.f32.gmra.mrb[0].mxu0 %v1806
    %v1874 = vpop.f32.mrb[0].mxu0
    %v1875 = vadd.f32 0.0, %v1874
    %v1876 = vpop.f32.mrb[0].mxu0
    %1877 = vdwg.mxu0
    %v1879 = vsel %vm1108, %v1792, 0
    %1881 = vmatprep.subr.mxu0 0.0
    %1882 = vmatpush1.msra.mxu0 %v1037
    %1883 = vmatprep.subr.mxu0 0.0
    %1884 = vmatpush1.msra.mxu0 0.0
    %1885 = vmatprep.subr.mxu0 0.0
    %1886 = vmatpush1.msra.mxu0 0.0
    %1887 = vmatprep.subr.mxu0 0.0
    %1888 = vmatpush1.msra.mxu0 0.0
    %1889 = vmatprep.subr.mxu0 0.0
    %1890 = vmatpush1.msra.mxu0 0.0
    %1891 = vmatprep.subr.mxu0 0.0
    %1892 = vmatpush1.msra.mxu0 0.0
    %1893 = vmatprep.subr.mxu0 0.0
    %1894 = vmatpush1.msra.mxu0 0.0
    %1895 = vmatprep.subr.mxu0 0.0
    %1896 = vmatpush1.msra.mxu0 0.0
    %1897 = vmatprep.subr.mxu0 0.0
    %1898 = vmatpush1.msra.mxu0 0.0
    %1899 = vmatprep.subr.mxu0 0.0
    %1900 = vmatpush1.msra.mxu0 0.0
    %1901 = vmatprep.subr.mxu0 0.0
    %1902 = vmatpush1.msra.mxu0 0.0
    %1903 = vmatprep.subr.mxu0 0.0
    %1904 = vmatpush1.msra.mxu0 0.0
    %1905 = vmatprep.subr.mxu0 0.0
    %1906 = vmatpush1.msra.mxu0 0.0
    %1907 = vmatprep.subr.mxu0 0.0
    %1908 = vmatpush1.msra.mxu0 0.0
    %1909 = vmatprep.subr.mxu0 0.0
    %1910 = vmatpush1.msra.mxu0 0.0
    %1911 = vmatprep.subr.mxu0 0.0
    %1912 = vmatpush1.msra.mxu0 0.0
    %1913 = vmatprep.subr.mxu0 0.0
    %1914 = vmatpush1.msra.mxu0 0.0
    %1915 = vmatprep.subr.mxu0 0.0
    %1916 = vmatpush1.msra.mxu0 0.0
    %1917 = vmatprep.subr.mxu0 0.0
    %1918 = vmatpush1.msra.mxu0 0.0
    %1919 = vmatprep.subr.mxu0 0.0
    %1920 = vmatpush1.msra.mxu0 0.0
    %1921 = vmatprep.subr.mxu0 0.0
    %1922 = vmatpush1.msra.mxu0 0.0
    %1923 = vmatprep.subr.mxu0 0.0
    %1924 = vmatpush1.msra.mxu0 0.0
    %1925 = vmatprep.subr.mxu0 0.0
    %1926 = vmatpush1.msra.mxu0 0.0
    %1927 = vmatprep.subr.mxu0 0.0
    %1928 = vmatpush1.msra.mxu0 0.0
    %1929 = vmatprep.subr.mxu0 0.0
    %1930 = vmatpush1.msra.mxu0 0.0
    %1931 = vmatprep.subr.mxu0 0.0
    %1932 = vmatpush1.msra.mxu0 0.0
    %1933 = vmatprep.subr.mxu0 0.0
    %1934 = vmatpush1.msra.mxu0 0.0
    %1935 = vmatprep.subr.mxu0 0.0
    %1936 = vmatpush1.msra.mxu0 0.0
    %1937 = vmatprep.subr.mxu0 0.0
    %1938 = vmatpush1.msra.mxu0 0.0
    %1939 = vmatprep.subr.mxu0 0.0
    %1940 = vmatpush1.msra.mxu0 0.0
    %1941 = vmatprep.subr.mxu0 0.0
    %1942 = vmatpush1.msra.mxu0 0.0
    %1943 = vmatprep.subr.mxu0 0.0
    %1944 = vmatpush1.msra.mxu0 0.0
    %1945 = vmatprep.mubr.f32.mxu0 0.0
    %1946 = vmatmul.mubr.f32.gmra.mrb[0].mxu0 %v1879
    %v1947 = vpop.f32.mrb[0].mxu0
    %v1948 = vadd.f32 0.0, %v1947
    %v1949 = vpop.f32.mrb[0].mxu0
    %1950 = vdwg.mxu0
    %v1952 = vsel %vm1108, %v1794, 0
    %1954 = vmatprep.subr.mxu0 0.0
    %1955 = vmatpush1.msra.mxu0 %v1038
    %1956 = vmatprep.subr.mxu0 0.0
    %1957 = vmatpush1.msra.mxu0 0.0
    %1958 = vmatprep.subr.mxu0 0.0
    %1959 = vmatpush1.msra.mxu0 0.0
    %1960 = vmatprep.subr.mxu0 0.0
    %1961 = vmatpush1.msra.mxu0 0.0
    %1962 = vmatprep.subr.mxu0 0.0
    %1963 = vmatpush1.msra.mxu0 0.0
    %1964 = vmatprep.subr.mxu0 0.0
    %1965 = vmatpush1.msra.mxu0 0.0
    %1966 = vmatprep.subr.mxu0 0.0
    %1967 = vmatpush1.msra.mxu0 0.0
    %1968 = vmatprep.subr.mxu0 0.0
    %1969 = vmatpush1.msra.mxu0 0.0
    %1970 = vmatprep.subr.mxu0 0.0
    %1971 = vmatpush1.msra.mxu0 0.0
    %1972 = vmatprep.subr.mxu0 0.0
    %1973 = vmatpush1.msra.mxu0 0.0
    %1974 = vmatprep.subr.mxu0 0.0
    %1975 = vmatpush1.msra.mxu0 0.0
    %1976 = vmatprep.subr.mxu0 0.0
    %1977 = vmatpush1.msra.mxu0 0.0
    %1978 = vmatprep.subr.mxu0 0.0
    %1979 = vmatpush1.msra.mxu0 0.0
    %1980 = vmatprep.subr.mxu0 0.0
    %1981 = vmatpush1.msra.mxu0 0.0
    %1982 = vmatprep.subr.mxu0 0.0
    %1983 = vmatpush1.msra.mxu0 0.0
    %1984 = vmatprep.subr.mxu0 0.0
    %1985 = vmatpush1.msra.mxu0 0.0
    %1986 = vmatprep.subr.mxu0 0.0
    %1987 = vmatpush1.msra.mxu0 0.0
    %1988 = vmatprep.subr.mxu0 0.0
    %1989 = vmatpush1.msra.mxu0 0.0
    %1990 = vmatprep.subr.mxu0 0.0
    %1991 = vmatpush1.msra.mxu0 0.0
    %1992 = vmatprep.subr.mxu0 0.0
    %1993 = vmatpush1.msra.mxu0 0.0
    %1994 = vmatprep.subr.mxu0 0.0
    %1995 = vmatpush1.msra.mxu0 0.0
    %1996 = vmatprep.subr.mxu0 0.0
    %1997 = vmatpush1.msra.mxu0 0.0
    %1998 = vmatprep.subr.mxu0 0.0
    %1999 = vmatpush1.msra.mxu0 0.0
    %2000 = vmatprep.subr.mxu0 0.0
    %2001 = vmatpush1.msra.mxu0 0.0
    %2002 = vmatprep.subr.mxu0 0.0
    %2003 = vmatpush1.msra.mxu0 0.0
    %2004 = vmatprep.subr.mxu0 0.0
    %2005 = vmatpush1.msra.mxu0 0.0
    %2006 = vmatprep.subr.mxu0 0.0
    %2007 = vmatpush1.msra.mxu0 0.0
    %2008 = vmatprep.subr.mxu0 0.0
    %2009 = vmatpush1.msra.mxu0 0.0
    %2010 = vmatprep.subr.mxu0 0.0
    %2011 = vmatpush1.msra.mxu0 0.0
    %2012 = vmatprep.subr.mxu0 0.0
    %2013 = vmatpush1.msra.mxu0 0.0
    %2014 = vmatprep.subr.mxu0 0.0
    %2015 = vmatpush1.msra.mxu0 0.0
    %2016 = vmatprep.subr.mxu0 0.0
    %2017 = vmatpush1.msra.mxu0 0.0
    %2018 = vmatprep.mubr.f32.mxu0 0.0
    %2019 = vmatmul.mubr.f32.gmra.mrb[0].mxu0 %v1952
    %v2020 = vpop.f32.mrb[0].mxu0
    %v2021 = vadd.f32 0.0, %v2020
    %v2022 = vpop.f32.mrb[0].mxu0
    %2023 = vdwg.mxu0
    %v2025 = vsel %vm1108, %v1796, 0
    %2027 = vmatprep.subr.mxu0 0.0
    %2028 = vmatpush1.msra.mxu0 %v1039
    %2029 = vmatprep.subr.mxu0 0.0
    %2030 = vmatpush1.msra.mxu0 0.0
    %2031 = vmatprep.subr.mxu0 0.0
    %2032 = vmatpush1.msra.mxu0 0.0
    %2033 = vmatprep.subr.mxu0 0.0
    %2034 = vmatpush1.msra.mxu0 0.0
    %2035 = vmatprep.subr.mxu0 0.0
    %2036 = vmatpush1.msra.mxu0 0.0
    %2037 = vmatprep.subr.mxu0 0.0
    %2038 = vmatpush1.msra.mxu0 0.0
    %2039 = vmatprep.subr.mxu0 0.0
    %2040 = vmatpush1.msra.mxu0 0.0
    %2041 = vmatprep.subr.mxu0 0.0
    %2042 = vmatpush1.msra.mxu0 0.0
    %2043 = vmatprep.subr.mxu0 0.0
    %2044 = vmatpush1.msra.mxu0 0.0
    %2045 = vmatprep.subr.mxu0 0.0
    %2046 = vmatpush1.msra.mxu0 0.0
    %2047 = vmatprep.subr.mxu0 0.0
    %2048 = vmatpush1.msra.mxu0 0.0
    %2049 = vmatprep.subr.mxu0 0.0
    %2050 = vmatpush1.msra.mxu0 0.0
    %2051 = vmatprep.subr.mxu0 0.0
    %2052 = vmatpush1.msra.mxu0 0.0
    %2053 = vmatprep.subr.mxu0 0.0
    %2054 = vmatpush1.msra.mxu0 0.0
    %2055 = vmatprep.subr.mxu0 0.0
    %2056 = vmatpush1.msra.mxu0 0.0
    %2057 = vmatprep.subr.mxu0 0.0
    %2058 = vmatpush1.msra.mxu0 0.0
    %2059 = vmatprep.subr.mxu0 0.0
    %2060 = vmatpush1.msra.mxu0 0.0
    %2061 = vmatprep.subr.mxu0 0.0
    %2062 = vmatpush1.msra.mxu0 0.0
    %2063 = vmatprep.subr.mxu0 0.0
    %2064 = vmatpush1.msra.mxu0 0.0
    %2065 = vmatprep.subr.mxu0 0.0
    %2066 = vmatpush1.msra.mxu0 0.0
    %2067 = vmatprep.subr.mxu0 0.0
    %2068 = vmatpush1.msra.mxu0 0.0
    %2069 = vmatprep.subr.mxu0 0.0
    %2070 = vmatpush1.msra.mxu0 0.0
    %2071 = vmatprep.subr.mxu0 0.0
    %2072 = vmatpush1.msra.mxu0 0.0
    %2073 = vmatprep.subr.mxu0 0.0
    %2074 = vmatpush1.msra.mxu0 0.0
    %2075 = vmatprep.subr.mxu0 0.0
    %2076 = vmatpush1.msra.mxu0 0.0
    %2077 = vmatprep.subr.mxu0 0.0
    %2078 = vmatpush1.msra.mxu0 0.0
    %2079 = vmatprep.subr.mxu0 0.0
    %2080 = vmatpush1.msra.mxu0 0.0
    %2081 = vmatprep.subr.mxu0 0.0
    %2082 = vmatpush1.msra.mxu0 0.0
    %2083 = vmatprep.subr.mxu0 0.0
    %2084 = vmatpush1.msra.mxu0 0.0
    %2085 = vmatprep.subr.mxu0 0.0
    %2086 = vmatpush1.msra.mxu0 0.0
    %2087 = vmatprep.subr.mxu0 0.0
    %2088 = vmatpush1.msra.mxu0 0.0
    %2089 = vmatprep.subr.mxu0 0.0
    %2090 = vmatpush1.msra.mxu0 0.0
    %2091 = vmatprep.mubr.f32.mxu0 0.0
    %2092 = vmatmul.mubr.f32.gmra.mrb[0].mxu0 %v2025
    %v2093 = vpop.f32.mrb[0].mxu0
    %v2094 = vadd.f32 0.0, %v2093
    %v2095 = vpop.f32.mrb[0].mxu0
    %2096 = vdwg.mxu0
    %v2098 = vsel %vm1108, %v1798, 0
    %2100 = vmatprep.subr.mxu0 0.0
    %2101 = vmatpush1.msra.mxu0 %v1104
    %2102 = vmatprep.subr.mxu0 0.0
    %2103 = vmatpush1.msra.mxu0 0.0
    %2104 = vmatprep.subr.mxu0 0.0
    %2105 = vmatpush1.msra.mxu0 0.0
    %2106 = vmatprep.subr.mxu0 0.0
    %2107 = vmatpush1.msra.mxu0 0.0
    %2108 = vmatprep.subr.mxu0 0.0
    %2109 = vmatpush1.msra.mxu0 0.0
    %2110 = vmatprep.subr.mxu0 0.0
    %2111 = vmatpush1.msra.mxu0 0.0
    %2112 = vmatprep.subr.mxu0 0.0
    %2113 = vmatpush1.msra.mxu0 0.0
    %2114 = vmatprep.subr.mxu0 0.0
    %2115 = vmatpush1.msra.mxu0 0.0
    %2116 = vmatprep.subr.mxu0 0.0
    %2117 = vmatpush1.msra.mxu0 0.0
    %2118 = vmatprep.subr.mxu0 0.0
    %2119 = vmatpush1.msra.mxu0 0.0
    %2120 = vmatprep.subr.mxu0 0.0
    %2121 = vmatpush1.msra.mxu0 0.0
    %2122 = vmatprep.subr.mxu0 0.0
    %2123 = vmatpush1.msra.mxu0 0.0
    %2124 = vmatprep.subr.mxu0 0.0
    %2125 = vmatpush1.msra.mxu0 0.0
    %2126 = vmatprep.subr.mxu0 0.0
    %2127 = vmatpush1.msra.mxu0 0.0
    %2128 = vmatprep.subr.mxu0 0.0
    %2129 = vmatpush1.msra.mxu0 0.0
    %2130 = vmatprep.subr.mxu0 0.0
    %2131 = vmatpush1.msra.mxu0 0.0
    %2132 = vmatprep.subr.mxu0 0.0
    %2133 = vmatpush1.msra.mxu0 0.0
    %2134 = vmatprep.subr.mxu0 0.0
    %2135 = vmatpush1.msra.mxu0 0.0
    %2136 = vmatprep.subr.mxu0 0.0
    %2137 = vmatpush1.msra.mxu0 0.0
    %2138 = vmatprep.subr.mxu0 0.0
    %2139 = vmatpush1.msra.mxu0 0.0
    %2140 = vmatprep.subr.mxu0 0.0
    %2141 = vmatpush1.msra.mxu0 0.0
    %2142 = vmatprep.subr.mxu0 0.0
    %2143 = vmatpush1.msra.mxu0 0.0
    %2144 = vmatprep.subr.mxu0 0.0
    %2145 = vmatpush1.msra.mxu0 0.0
    %2146 = vmatprep.subr.mxu0 0.0
    %2147 = vmatpush1.msra.mxu0 0.0
    %2148 = vmatprep.subr.mxu0 0.0
    %2149 = vmatpush1.msra.mxu0 0.0
    %2150 = vmatprep.subr.mxu0 0.0
    %2151 = vmatpush1.msra.mxu0 0.0
    %2152 = vmatprep.subr.mxu0 0.0
    %2153 = vmatpush1.msra.mxu0 0.0
    %2154 = vmatprep.subr.mxu0 0.0
    %2155 = vmatpush1.msra.mxu0 0.0
    %2156 = vmatprep.subr.mxu0 0.0
    %2157 = vmatpush1.msra.mxu0 0.0
    %2158 = vmatprep.subr.mxu0 0.0
    %2159 = vmatpush1.msra.mxu0 0.0
    %2160 = vmatprep.subr.mxu0 0.0
    %2161 = vmatpush1.msra.mxu0 0.0
    %2162 = vmatprep.subr.mxu0 0.0
    %2163 = vmatpush1.msra.mxu0 0.0
    %2164 = vmatprep.mubr.f32.mxu0 0.0
    %2165 = vmatmul.mubr.f32.gmra.mrb[0].mxu0 %v2098
    %v2166 = vpop.f32.mrb[0].mxu0
    %v2167 = vadd.f32 0.0, %v2166
    %v2168 = vpop.f32.mrb[0].mxu0
    %2169 = vdwg.mxu0
    %v2171 = vsel %vm1108, %v1800, 0
    %2173 = vmatprep.subr.mxu0 0.0
    %2174 = vmatpush1.msra.mxu0 %v1105
    %2175 = vmatprep.subr.mxu0 0.0
    %2176 = vmatpush1.msra.mxu0 0.0
    %2177 = vmatprep.subr.mxu0 0.0
    %2178 = vmatpush1.msra.mxu0 0.0
    %2179 = vmatprep.subr.mxu0 0.0
    %2180 = vmatpush1.msra.mxu0 0.0
    %2181 = vmatprep.subr.mxu0 0.0
    %2182 = vmatpush1.msra.mxu0 0.0
    %2183 = vmatprep.subr.mxu0 0.0
    %2184 = vmatpush1.msra.mxu0 0.0
    %2185 = vmatprep.subr.mxu0 0.0
    %2186 = vmatpush1.msra.mxu0 0.0
    %2187 = vmatprep.subr.mxu0 0.0
    %2188 = vmatpush1.msra.mxu0 0.0
    %2189 = vmatprep.subr.mxu0 0.0
    %2190 = vmatpush1.msra.mxu0 0.0
    %2191 = vmatprep.subr.mxu0 0.0
    %2192 = vmatpush1.msra.mxu0 0.0
    %2193 = vmatprep.subr.mxu0 0.0
    %2194 = vmatpush1.msra.mxu0 0.0
    %2195 = vmatprep.subr.mxu0 0.0
    %2196 = vmatpush1.msra.mxu0 0.0
    %2197 = vmatprep.subr.mxu0 0.0
    %2198 = vmatpush1.msra.mxu0 0.0
    %2199 = vmatprep.subr.mxu0 0.0
    %2200 = vmatpush1.msra.mxu0 0.0
    %2201 = vmatprep.subr.mxu0 0.0
    %2202 = vmatpush1.msra.mxu0 0.0
    %2203 = vmatprep.subr.mxu0 0.0
    %2204 = vmatpush1.msra.mxu0 0.0
    %2205 = vmatprep.subr.mxu0 0.0
    %2206 = vmatpush1.msra.mxu0 0.0
    %2207 = vmatprep.subr.mxu0 0.0
    %2208 = vmatpush1.msra.mxu0 0.0
    %2209 = vmatprep.subr.mxu0 0.0
    %2210 = vmatpush1.msra.mxu0 0.0
    %2211 = vmatprep.subr.mxu0 0.0
    %2212 = vmatpush1.msra.mxu0 0.0
    %2213 = vmatprep.subr.mxu0 0.0
    %2214 = vmatpush1.msra.mxu0 0.0
    %2215 = vmatprep.subr.mxu0 0.0
    %2216 = vmatpush1.msra.mxu0 0.0
    %2217 = vmatprep.subr.mxu0 0.0
    %2218 = vmatpush1.msra.mxu0 0.0
    %2219 = vmatprep.subr.mxu0 0.0
    %2220 = vmatpush1.msra.mxu0 0.0
    %2221 = vmatprep.subr.mxu0 0.0
    %2222 = vmatpush1.msra.mxu0 0.0
    %2223 = vmatprep.subr.mxu0 0.0
    %2224 = vmatpush1.msra.mxu0 0.0
    %2225 = vmatprep.subr.mxu0 0.0
    %2226 = vmatpush1.msra.mxu0 0.0
    %2227 = vmatprep.subr.mxu0 0.0
    %2228 = vmatpush1.msra.mxu0 0.0
    %2229 = vmatprep.subr.mxu0 0.0
    %2230 = vmatpush1.msra.mxu0 0.0
    %2231 = vmatprep.subr.mxu0 0.0
    %2232 = vmatpush1.msra.mxu0 0.0
    %2233 = vmatprep.subr.mxu0 0.0
    %2234 = vmatpush1.msra.mxu0 0.0
    %2235 = vmatprep.subr.mxu0 0.0
    %2236 = vmatpush1.msra.mxu0 0.0
    %2237 = vmatprep.mubr.f32.mxu0 0.0
    %2238 = vmatmul.mubr.f32.gmra.mrb[0].mxu0 %v2171
    %v2239 = vpop.f32.mrb[0].mxu0
    %v2240 = vadd.f32 0.0, %v2239
    %v2241 = vpop.f32.mrb[0].mxu0
    %2242 = vdwg.mxu0
    %v2244 = vsel %vm1108, %v1802, 0
    %2246 = vmatprep.subr.mxu0 0.0
    %2247 = vmatpush1.msra.mxu0 %v1106
    %2248 = vmatprep.subr.mxu0 0.0
    %2249 = vmatpush1.msra.mxu0 0.0
    %2250 = vmatprep.subr.mxu0 0.0
    %2251 = vmatpush1.msra.mxu0 0.0
    %2252 = vmatprep.subr.mxu0 0.0
    %2253 = vmatpush1.msra.mxu0 0.0
    %2254 = vmatprep.subr.mxu0 0.0
    %2255 = vmatpush1.msra.mxu0 0.0
    %2256 = vmatprep.subr.mxu0 0.0
    %2257 = vmatpush1.msra.mxu0 0.0
    %2258 = vmatprep.subr.mxu0 0.0
    %2259 = vmatpush1.msra.mxu0 0.0
    %2260 = vmatprep.subr.mxu0 0.0
    %2261 = vmatpush1.msra.mxu0 0.0
    %2262 = vmatprep.subr.mxu0 0.0
    %2263 = vmatpush1.msra.mxu0 0.0
    %2264 = vmatprep.subr.mxu0 0.0
    %2265 = vmatpush1.msra.mxu0 0.0
    %2266 = vmatprep.subr.mxu0 0.0
    %2267 = vmatpush1.msra.mxu0 0.0
    %2268 = vmatprep.subr.mxu0 0.0
    %2269 = vmatpush1.msra.mxu0 0.0
    %2270 = vmatprep.subr.mxu0 0.0
    %2271 = vmatpush1.msra.mxu0 0.0
    %2272 = vmatprep.subr.mxu0 0.0
    %2273 = vmatpush1.msra.mxu0 0.0
    %2274 = vmatprep.subr.mxu0 0.0
    %2275 = vmatpush1.msra.mxu0 0.0
    %2276 = vmatprep.subr.mxu0 0.0
    %2277 = vmatpush1.msra.mxu0 0.0
    %2278 = vmatprep.subr.mxu0 0.0
    %2279 = vmatpush1.msra.mxu0 0.0
    %2280 = vmatprep.subr.mxu0 0.0
    %2281 = vmatpush1.msra.mxu0 0.0
    %2282 = vmatprep.subr.mxu0 0.0
    %2283 = vmatpush1.msra.mxu0 0.0
    %2284 = vmatprep.subr.mxu0 0.0
    %2285 = vmatpush1.msra.mxu0 0.0
    %2286 = vmatprep.subr.mxu0 0.0
    %2287 = vmatpush1.msra.mxu0 0.0
    %2288 = vmatprep.subr.mxu0 0.0
    %2289 = vmatpush1.msra.mxu0 0.0
    %2290 = vmatprep.subr.mxu0 0.0
    %2291 = vmatpush1.msra.mxu0 0.0
    %2292 = vmatprep.subr.mxu0 0.0
    %2293 = vmatpush1.msra.mxu0 0.0
    %2294 = vmatprep.subr.mxu0 0.0
    %2295 = vmatpush1.msra.mxu0 0.0
    %2296 = vmatprep.subr.mxu0 0.0
    %2297 = vmatpush1.msra.mxu0 0.0
    %2298 = vmatprep.subr.mxu0 0.0
    %2299 = vmatpush1.msra.mxu0 0.0
    %2300 = vmatprep.subr.mxu0 0.0
    %2301 = vmatpush1.msra.mxu0 0.0
    %2302 = vmatprep.subr.mxu0 0.0
    %2303 = vmatpush1.msra.mxu0 0.0
    %2304 = vmatprep.subr.mxu0 0.0
    %2305 = vmatpush1.msra.mxu0 0.0
    %2306 = vmatprep.subr.mxu0 0.0
    %2307 = vmatpush1.msra.mxu0 0.0
    %2308 = vmatprep.subr.mxu0 0.0
    %2309 = vmatpush1.msra.mxu0 0.0
    %2310 = vmatprep.mubr.f32.mxu0 0.0
    %2311 = vmatmul.mubr.f32.gmra.mrb[0].mxu0 %v2244
    %v2312 = vpop.f32.mrb[0].mxu0
    %v2313 = vadd.f32 0.0, %v2312
    %v2314 = vpop.f32.mrb[0].mxu0
    %2315 = vdwg.mxu0
    %v2317 = vsel %vm1108, %v1804, 0
    %2319 = vmatprep.subr.mxu0 0.0
    %2320 = vmatpush1.msra.mxu0 %v1107
    %2321 = vmatprep.subr.mxu0 0.0
    %2322 = vmatpush1.msra.mxu0 0.0
    %2323 = vmatprep.subr.mxu0 0.0
    %2324 = vmatpush1.msra.mxu0 0.0
    %2325 = vmatprep.subr.mxu0 0.0
    %2326 = vmatpush1.msra.mxu0 0.0
    %2327 = vmatprep.subr.mxu0 0.0
    %2328 = vmatpush1.msra.mxu0 0.0
    %2329 = vmatprep.subr.mxu0 0.0
    %2330 = vmatpush1.msra.mxu0 0.0
    %2331 = vmatprep.subr.mxu0 0.0
    %2332 = vmatpush1.msra.mxu0 0.0
    %2333 = vmatprep.subr.mxu0 0.0
    %2334 = vmatpush1.msra.mxu0 0.0
    %2335 = vmatprep.subr.mxu0 0.0
    %2336 = vmatpush1.msra.mxu0 0.0
    %2337 = vmatprep.subr.mxu0 0.0
    %2338 = vmatpush1.msra.mxu0 0.0
    %2339 = vmatprep.subr.mxu0 0.0
    %2340 = vmatpush1.msra.mxu0 0.0
    %2341 = vmatprep.subr.mxu0 0.0
    %2342 = vmatpush1.msra.mxu0 0.0
    %2343 = vmatprep.subr.mxu0 0.0
    %2344 = vmatpush1.msra.mxu0 0.0
    %2345 = vmatprep.subr.mxu0 0.0
    %2346 = vmatpush1.msra.mxu0 0.0
    %2347 = vmatprep.subr.mxu0 0.0
    %2348 = vmatpush1.msra.mxu0 0.0
    %2349 = vmatprep.subr.mxu0 0.0
    %2350 = vmatpush1.msra.mxu0 0.0
    %2351 = vmatprep.subr.mxu0 0.0
    %2352 = vmatpush1.msra.mxu0 0.0
    %2353 = vmatprep.subr.mxu0 0.0
    %2354 = vmatpush1.msra.mxu0 0.0
    %2355 = vmatprep.subr.mxu0 0.0
    %2356 = vmatpush1.msra.mxu0 0.0
    %2357 = vmatprep.subr.mxu0 0.0
    %2358 = vmatpush1.msra.mxu0 0.0
    %2359 = vmatprep.subr.mxu0 0.0
    %2360 = vmatpush1.msra.mxu0 0.0
    %2361 = vmatprep.subr.mxu0 0.0
    %2362 = vmatpush1.msra.mxu0 0.0
    %2363 = vmatprep.subr.mxu0 0.0
    %2364 = vmatpush1.msra.mxu0 0.0
    %2365 = vmatprep.subr.mxu0 0.0
    %2366 = vmatpush1.msra.mxu0 0.0
    %2367 = vmatprep.subr.mxu0 0.0
    %2368 = vmatpush1.msra.mxu0 0.0
    %2369 = vmatprep.subr.mxu0 0.0
    %2370 = vmatpush1.msra.mxu0 0.0
    %2371 = vmatprep.subr.mxu0 0.0
    %2372 = vmatpush1.msra.mxu0 0.0
    %2373 = vmatprep.subr.mxu0 0.0
    %2374 = vmatpush1.msra.mxu0 0.0
    %2375 = vmatprep.subr.mxu0 0.0
    %2376 = vmatpush1.msra.mxu0 0.0
    %2377 = vmatprep.subr.mxu0 0.0
    %2378 = vmatpush1.msra.mxu0 0.0
    %2379 = vmatprep.subr.mxu0 0.0
    %2380 = vmatpush1.msra.mxu0 0.0
    %2381 = vmatprep.subr.mxu0 0.0
    %2382 = vmatpush1.msra.mxu0 0.0
    %2383 = vmatprep.mubr.f32.mxu0 0.0
    %2384 = vmatmul.mubr.f32.gmra.mrb[0].mxu0 %v2317
    %v2385 = vpop.f32.mrb[0].mxu0
    %v2386 = vadd.f32 0.0, %v2385
    %v2387 = vpop.f32.mrb[0].mxu0
    %2388 = vdwg.mxu0
    %v2389 = vcombine.low %v1875, %v2021
    %v2390 = vcombine.high %v1875, %v2021
    %v2392 = vunpack.c.l.s4 1983009808
    %v2393 = vunpack.c.0.s8 %v2392
    %v2394 = vlaneseq
    %v2395 = vshrl.u32 %v2394, 7
    %v2396 = vsub.s32 %v2393, %v2395
    %v2397 = vrot.slane %v2389, %v2396
    %v2399 = vunpack.c.l.s4 1983009808
    %v2400 = vunpack.c.0.s8 %v2399
    %v2401 = vlaneseq
    %v2402 = vshrl.u32 %v2401, 7
    %v2403 = vsub.s32 %v2400, %v2402
    %v2404 = vrot.slane %v2390, %v2403
    %v2405 = vcombine.low %v1948, %v2094
    %v2406 = vcombine.high %v1948, %v2094
    %v2408 = vunpack.c.l.s4 1983009808
    %v2409 = vunpack.c.0.s8 %v2408
    %v2410 = vlaneseq
    %v2411 = vshrl.u32 %v2410, 7
    %v2412 = vsub.s32 %v2409, %v2411
    %v2413 = vrot.slane %v2405, %v2412
    %v2415 = vunpack.c.l.s4 1983009808
    %v2416 = vunpack.c.0.s8 %v2415
    %v2417 = vlaneseq
    %v2418 = vshrl.u32 %v2417, 7
    %v2419 = vsub.s32 %v2416, %v2418
    %v2420 = vrot.slane %v2406, %v2419
    %v2421 = vcombine.low %v2397, %v2413
    %v2422 = vcombine.high %v2397, %v2413
    %v2424 = vunpack.c.l.s4 1934713408
    %v2425 = vunpack.c.0.s8 %v2424
    %v2426 = vlaneseq
    %v2427 = vshrl.u32 %v2426, 7
    %v2428 = vsub.s32 %v2425, %v2427
    %v2429 = vrot.slane %v2421, %v2428
    %v2431 = vunpack.c.l.s4 1934713408
    %v2432 = vunpack.c.0.s8 %v2431
    %v2433 = vlaneseq
    %v2434 = vshrl.u32 %v2433, 7
    %v2435 = vsub.s32 %v2432, %v2434
    %v2436 = vrot.slane %v2422, %v2435
    %v2437 = vcombine.low %v2404, %v2420
    %v2438 = vcombine.high %v2404, %v2420
    %v2440 = vunpack.c.l.s4 1934713408
    %v2441 = vunpack.c.0.s8 %v2440
    %v2442 = vlaneseq
    %v2443 = vshrl.u32 %v2442, 7
    %v2444 = vsub.s32 %v2441, %v2443
    %v2445 = vrot.slane %v2437, %v2444
    %v2447 = vunpack.c.l.s4 1934713408
    %v2448 = vunpack.c.0.s8 %v2447
    %v2449 = vlaneseq
    %v2450 = vshrl.u32 %v2449, 7
    %v2451 = vsub.s32 %v2448, %v2450
    %v2452 = vrot.slane %v2438, %v2451
    %v2453 = vcombine.high %v2429, 0.0
    %v2454 = vcombine.high %v2436, 0.0
    %v2455 = vcombine.high %v2445, 0.0
    %v2456 = vcombine.high %v2452, 0.0
    %v2457 = vcombine.low %v2167, %v2313
    %v2458 = vcombine.high %v2167, %v2313
    %v2460 = vunpack.c.l.s4 1983009808
    %v2461 = vunpack.c.0.s8 %v2460
    %v2462 = vlaneseq
    %v2463 = vshrl.u32 %v2462, 7
    %v2464 = vsub.s32 %v2461, %v2463
    %v2465 = vrot.slane %v2457, %v2464
    %v2467 = vunpack.c.l.s4 1983009808
    %v2468 = vunpack.c.0.s8 %v2467
    %v2469 = vlaneseq
    %v2470 = vshrl.u32 %v2469, 7
    %v2471 = vsub.s32 %v2468, %v2470
    %v2472 = vrot.slane %v2458, %v2471
    %v2473 = vcombine.low %v2240, %v2386
    %v2474 = vcombine.high %v2240, %v2386
    %v2476 = vunpack.c.l.s4 1983009808
    %v2477 = vunpack.c.0.s8 %v2476
    %v2478 = vlaneseq
    %v2479 = vshrl.u32 %v2478, 7
    %v2480 = vsub.s32 %v2477, %v2479
    %v2481 = vrot.slane %v2473, %v2480
    %v2483 = vunpack.c.l.s4 1983009808
    %v2484 = vunpack.c.0.s8 %v2483
    %v2485 = vlaneseq
    %v2486 = vshrl.u32 %v2485, 7
    %v2487 = vsub.s32 %v2484, %v2486
    %v2488 = vrot.slane %v2474, %v2487
    %v2489 = vcombine.low %v2465, %v2481
    %v2490 = vcombine.high %v2465, %v2481
    %v2492 = vunpack.c.l.s4 1934713408
    %v2493 = vunpack.c.0.s8 %v2492
    %v2494 = vlaneseq
    %v2495 = vshrl.u32 %v2494, 7
    %v2496 = vsub.s32 %v2493, %v2495
    %v2497 = vrot.slane %v2489, %v2496
    %v2499 = vunpack.c.l.s4 1934713408
    %v2500 = vunpack.c.0.s8 %v2499
    %v2501 = vlaneseq
    %v2502 = vshrl.u32 %v2501, 7
    %v2503 = vsub.s32 %v2500, %v2502
    %v2504 = vrot.slane %v2490, %v2503
    %v2505 = vcombine.low %v2472, %v2488
    %v2506 = vcombine.high %v2472, %v2488
    %v2508 = vunpack.c.l.s4 1934713408
    %v2509 = vunpack.c.0.s8 %v2508
    %v2510 = vlaneseq
    %v2511 = vshrl.u32 %v2510, 7
    %v2512 = vsub.s32 %v2509, %v2511
    %v2513 = vrot.slane %v2505, %v2512
    %v2515 = vunpack.c.l.s4 1934713408
    %v2516 = vunpack.c.0.s8 %v2515
    %v2517 = vlaneseq
    %v2518 = vshrl.u32 %v2517, 7
    %v2519 = vsub.s32 %v2516, %v2518
    %v2520 = vrot.slane %v2506, %v2519
    %v2521 = vcombine.high %v2497, 0.0
    %v2522 = vcombine.high %v2504, 0.0
    %v2523 = vcombine.high %v2513, 0.0
    %v2524 = vcombine.high %v2520, 0.0
    %v2525 = vcombine.low %v2429, %v2436
    %v2527 = vunpack.c.l.s4 1983009808
    %v2528 = vunpack.c.0.s8 %v2527
    %v2529 = vlaneseq
    %v2530 = vshrl.u32 %v2529, 7
    %v2531 = vsub.s32 %v2528, %v2530
    %v2532 = vrot.slane %v2525, %v2531
    %v2533 = vcombine.low %v2453, %v2454
    %v2535 = vunpack.c.l.s4 1983009808
    %v2536 = vunpack.c.0.s8 %v2535
    %v2537 = vlaneseq
    %v2538 = vshrl.u32 %v2537, 7
    %v2539 = vsub.s32 %v2536, %v2538
    %v2540 = vrot.slane %v2533, %v2539
    %v2541 = vcombine.low %v2445, %v2452
    %v2543 = vunpack.c.l.s4 1983009808
    %v2544 = vunpack.c.0.s8 %v2543
    %v2545 = vlaneseq
    %v2546 = vshrl.u32 %v2545, 7
    %v2547 = vsub.s32 %v2544, %v2546
    %v2548 = vrot.slane %v2541, %v2547
    %v2549 = vcombine.low %v2455, %v2456
    %v2551 = vunpack.c.l.s4 1983009808
    %v2552 = vunpack.c.0.s8 %v2551
    %v2553 = vlaneseq
    %v2554 = vshrl.u32 %v2553, 7
    %v2555 = vsub.s32 %v2552, %v2554
    %v2556 = vrot.slane %v2549, %v2555
    %v2557 = vcombine.low %v2532, %v2540
    %v2558 = vcombine.high %v2532, %v2540
    %v2560 = vunpack.c.l.s4 1934713408
    %v2561 = vunpack.c.0.s8 %v2560
    %v2562 = vlaneseq
    %v2563 = vshrl.u32 %v2562, 7
    %v2564 = vsub.s32 %v2561, %v2563
    %v2565 = vrot.slane %v2557, %v2564
    %v2567 = vunpack.c.l.s4 1934713408
    %v2568 = vunpack.c.0.s8 %v2567
    %v2569 = vlaneseq
    %v2570 = vshrl.u32 %v2569, 7
    %v2571 = vsub.s32 %v2568, %v2570
    %v2572 = vrot.slane %v2558, %v2571
    %v2573 = vcombine.low %v2548, %v2556
    %v2574 = vcombine.high %v2548, %v2556
    %v2576 = vunpack.c.l.s4 1934713408
    %v2577 = vunpack.c.0.s8 %v2576
    %v2578 = vlaneseq
    %v2579 = vshrl.u32 %v2578, 7
    %v2580 = vsub.s32 %v2577, %v2579
    %v2581 = vrot.slane %v2573, %v2580
    %v2583 = vunpack.c.l.s4 1934713408
    %v2584 = vunpack.c.0.s8 %v2583
    %v2585 = vlaneseq
    %v2586 = vshrl.u32 %v2585, 7
    %v2587 = vsub.s32 %v2584, %v2586
    %v2588 = vrot.slane %v2574, %v2587
    %v2589 = vcombine.low %v2565, %v2581
    %v2590 = vcombine.high %v2565, %v2581
    %v2591 = vcombine.low %v2572, %v2588
    %v2592 = vcombine.high %v2572, %v2588
    %v2593 = vcombine.low %v2497, %v2504
    %v2595 = vunpack.c.l.s4 1983009808
    %v2596 = vunpack.c.0.s8 %v2595
    %v2597 = vlaneseq
    %v2598 = vshrl.u32 %v2597, 7
    %v2599 = vsub.s32 %v2596, %v2598
    %v2600 = vrot.slane %v2593, %v2599
    %v2601 = vcombine.low %v2521, %v2522
    %v2603 = vunpack.c.l.s4 1983009808
    %v2604 = vunpack.c.0.s8 %v2603
    %v2605 = vlaneseq
    %v2606 = vshrl.u32 %v2605, 7
    %v2607 = vsub.s32 %v2604, %v2606
    %v2608 = vrot.slane %v2601, %v2607
    %v2609 = vcombine.low %v2513, %v2520
    %v2611 = vunpack.c.l.s4 1983009808
    %v2612 = vunpack.c.0.s8 %v2611
    %v2613 = vlaneseq
    %v2614 = vshrl.u32 %v2613, 7
    %v2615 = vsub.s32 %v2612, %v2614
    %v2616 = vrot.slane %v2609, %v2615
    %v2617 = vcombine.low %v2523, %v2524
    %v2619 = vunpack.c.l.s4 1983009808
    %v2620 = vunpack.c.0.s8 %v2619
    %v2621 = vlaneseq
    %v2622 = vshrl.u32 %v2621, 7
    %v2623 = vsub.s32 %v2620, %v2622
    %v2624 = vrot.slane %v2617, %v2623
    %v2625 = vcombine.low %v2600, %v2608
    %v2626 = vcombine.high %v2600, %v2608
    %v2628 = vunpack.c.l.s4 1934713408
    %v2629 = vunpack.c.0.s8 %v2628
    %v2630 = vlaneseq
    %v2631 = vshrl.u32 %v2630, 7
    %v2632 = vsub.s32 %v2629, %v2631
    %v2633 = vrot.slane %v2625, %v2632
    %v2635 = vunpack.c.l.s4 1934713408
    %v2636 = vunpack.c.0.s8 %v2635
    %v2637 = vlaneseq
    %v2638 = vshrl.u32 %v2637, 7
    %v2639 = vsub.s32 %v2636, %v2638
    %v2640 = vrot.slane %v2626, %v2639
    %v2641 = vcombine.low %v2616, %v2624
    %v2642 = vcombine.high %v2616, %v2624
    %v2644 = vunpack.c.l.s4 1934713408
    %v2645 = vunpack.c.0.s8 %v2644
    %v2646 = vlaneseq
    %v2647 = vshrl.u32 %v2646, 7
    %v2648 = vsub.s32 %v2645, %v2647
    %v2649 = vrot.slane %v2641, %v2648
    %v2651 = vunpack.c.l.s4 1934713408
    %v2652 = vunpack.c.0.s8 %v2651
    %v2653 = vlaneseq
    %v2654 = vshrl.u32 %v2653, 7
    %v2655 = vsub.s32 %v2652, %v2654
    %v2656 = vrot.slane %v2642, %v2655
    %v2657 = vcombine.low %v2633, %v2649
    %v2658 = vcombine.high %v2633, %v2649
    %v2659 = vcombine.low %v2640, %v2656
    %v2660 = vcombine.high %v2640, %v2656
    %2663 = vrot.lane.b32.xlu0 %v2590, 8
    %v2664 = vpop.permute.xlu0 %2663
    %2665 = vrot.lane.b32.xlu0 %v2658, 8
    %v2666 = vpop.permute.xlu0 %2665
    %2671 = vrot.lane.b32.xlu0 %v2591, 16
    %v2672 = vpop.permute.xlu0 %2671
    %2673 = vrot.lane.b32.xlu0 %v2659, 16
    %v2674 = vpop.permute.xlu0 %2673
    %2679 = vrot.lane.b32.xlu0 %v2592, 24
    %v2680 = vpop.permute.xlu0 %2679
    %2681 = vrot.lane.b32.xlu0 %v2660, 24
    %v2682 = vpop.permute.xlu0 %2681
    %v2685 = vsel %vm1108, %v2589, %v2664
    %v2686 = vsel %vm1108, %v2657, %v2666
    %vm2687 = vcmask 130048
    %v2688 = vsel %vm2687, %v2685, %v2672
    %v2689 = vsel %vm2687, %v2686, %v2674
    %vm2690 = vcmask 195584
    %v2691 = vsel %vm2690, %v2688, %v2680
    %v2692 = vsel %vm2690, %v2689, %v2682
    %v2693 = vlaneseq
    %v2694 = vshrl.u32 %v2693, 7
    %v2695 = vsub.s32 0, %v2694
    %v2696 = vrot.slane %v74, %v2695
    %2701 = vrot.lane.b32.xlu0 %v61, 32
    %v2702 = vpop.permute.xlu0 %2701
    %2703 = vrot.lane.b32.xlu0 %v62, 32
    %v2704 = vpop.permute.xlu0 %2703
    %2705 = vrot.lane.b32.xlu0 %v63, 32
    %v2706 = vpop.permute.xlu0 %2705
    %2707 = vrot.lane.b32.xlu0 %v64, 32
    %v2708 = vpop.permute.xlu0 %2707
    %v2714 = vsel %vm83, %v2691, 0
    %v2717 = vsel %vm83, %v2692, 0
    %2719 = vmatprep.subr.mxu0 0.0
    %2720 = vmatpush1.msra.mxu0 %v2702
    %2721 = vmatprep.subr.mxu0 0.0
    %2722 = vmatpush1.msra.mxu0 %v2704
    %2723 = vmatprep.subr.mxu0 0.0
    %2724 = vmatpush1.msra.mxu0 %v2706
    %2725 = vmatprep.subr.mxu0 0.0
    %2726 = vmatpush1.msra.mxu0 %v2708
    %2727 = vmatprep.subr.mxu0 0.0
    %2728 = vmatpush1.msra.mxu0 0.0
    %2729 = vmatprep.subr.mxu0 0.0
    %2730 = vmatpush1.msra.mxu0 0.0
    %2731 = vmatprep.subr.mxu0 0.0
    %2732 = vmatpush1.msra.mxu0 0.0
    %2733 = vmatprep.subr.mxu0 0.0
    %2734 = vmatpush1.msra.mxu0 0.0
    %2735 = vmatprep.subr.mxu0 0.0
    %2736 = vmatpush1.msra.mxu0 0.0
    %2737 = vmatprep.subr.mxu0 0.0
    %2738 = vmatpush1.msra.mxu0 0.0
    %2739 = vmatprep.subr.mxu0 0.0
    %2740 = vmatpush1.msra.mxu0 0.0
    %2741 = vmatprep.subr.mxu0 0.0
    %2742 = vmatpush1.msra.mxu0 0.0
    %2743 = vmatprep.subr.mxu0 0.0
    %2744 = vmatpush1.msra.mxu0 0.0
    %2745 = vmatprep.subr.mxu0 0.0
    %2746 = vmatpush1.msra.mxu0 0.0
    %2747 = vmatprep.subr.mxu0 0.0
    %2748 = vmatpush1.msra.mxu0 0.0
    %2749 = vmatprep.subr.mxu0 0.0
    %2750 = vmatpush1.msra.mxu0 0.0
    %2751 = vmatprep.subr.mxu0 0.0
    %2752 = vmatpush1.msra.mxu0 0.0
    %2753 = vmatprep.subr.mxu0 0.0
    %2754 = vmatpush1.msra.mxu0 0.0
    %2755 = vmatprep.subr.mxu0 0.0
    %2756 = vmatpush1.msra.mxu0 0.0
    %2757 = vmatprep.subr.mxu0 0.0
    %2758 = vmatpush1.msra.mxu0 0.0
    %2759 = vmatprep.subr.mxu0 0.0
    %2760 = vmatpush1.msra.mxu0 0.0
    %2761 = vmatprep.subr.mxu0 0.0
    %2762 = vmatpush1.msra.mxu0 0.0
    %2763 = vmatprep.subr.mxu0 0.0
    %2764 = vmatpush1.msra.mxu0 0.0
    %2765 = vmatprep.subr.mxu0 0.0
    %2766 = vmatpush1.msra.mxu0 0.0
    %2767 = vmatprep.subr.mxu0 0.0
    %2768 = vmatpush1.msra.mxu0 0.0
    %2769 = vmatprep.subr.mxu0 0.0
    %2770 = vmatpush1.msra.mxu0 0.0
    %2771 = vmatprep.subr.mxu0 0.0
    %2772 = vmatpush1.msra.mxu0 0.0
    %2773 = vmatprep.subr.mxu0 0.0
    %2774 = vmatpush1.msra.mxu0 0.0
    %2775 = vmatprep.subr.mxu0 0.0
    %2776 = vmatpush1.msra.mxu0 0.0
    %2777 = vmatprep.subr.mxu0 0.0
    %2778 = vmatpush1.msra.mxu0 0.0
    %2779 = vmatprep.subr.mxu0 0.0
    %2780 = vmatpush1.msra.mxu0 0.0
    %2781 = vmatprep.subr.mxu0 0.0
    %2782 = vmatpush1.msra.mxu0 0.0
    %2783 = vmatprep.mubr.f32.mxu0 0.0
    %2784 = vmatmul.mubr.f32.gmra.mrb[0].mxu0 %v2714
    %v2785 = vpop.f32.mrb[0].mxu0
    %v2786 = vadd.f32 %v2696, %v2785
    %v2787 = vpop.f32.mrb[0].mxu0
    %2788 = vmatprep.mubr.f32.mxu0 0.0
    %2789 = vmatmul.mubr.f32.gmra.mrb[0].mxu0 %v2717
    %v2790 = vpop.f32.mrb[0].mxu0
    %v2791 = vadd.f32 %v2696, %v2790
    %v2792 = vpop.f32.mrb[0].mxu0
    %2793 = vdwg.mxu0
    %v2794 = vadd.f32 %v59, %v2786
    %v2795 = vadd.f32 %v60, %v2791
    %v2796 = vsel %vm83, %v2794, 0.0
    %2797 = vadd.xlane.f32.xlu0 %v2796
    %v2798 = vpop.xlane.xlu0 %2797
    %v2799 = vsel %vm83, %v2795, 0.0
    %2800 = vadd.xlane.f32.xlu0 %v2799
    %v2801 = vpop.xlane.xlu0 %2800
    %v2802 = vmul.f32 %v2798, %v90
    %v2803 = vmul.f32 %v2801, %v90
    %v2804 = vsub.f32 %v2794, %v2802
    %v2805 = vsub.f32 %v2795, %v2803
    %v2806 = vmul.f32 %v2804, %v2804
    %v2807 = vmul.f32 %v2805, %v2805
    %v2808 = vsel %vm83, %v2806, 0.0
    %2809 = vadd.xlane.f32.xlu0 %v2808
    %v2810 = vpop.xlane.xlu0 %2809
    %v2811 = vsel %vm83, %v2807, 0.0
    %2812 = vadd.xlane.f32.xlu0 %v2811
    %v2813 = vpop.xlane.xlu0 %2812
    %v2814 = vmul.f32 %v2810, %v90
    %v2815 = vmul.f32 %v2813, %v90
    %v2816 = vadd.f32 %v2814, 1e-06
    %v2817 = vadd.f32 %v2815, 1e-06
    %v2818 = vrsqrt.pop %v2816
    %v2819 = vrsqrt.pop %v2817
    %v2820 = vmul.f32 %v2804, %v2818
    %v2821 = vmul.f32 %v2805, %v2819
    %v2822 = vlaneseq
    %v2823 = vshrl.u32 %v2822, 7
    %v2824 = vsub.s32 0, %v2823
    %v2825 = vrot.slane %v71, %v2824
    %v2826 = vmul.f32 %v2820, %v2825
    %v2827 = vmul.f32 %v2821, %v2825
    %v2828 = vlaneseq
    %v2829 = vshrl.u32 %v2828, 7
    %v2830 = vsub.s32 0, %v2829
    %v2831 = vrot.slane %v72, %v2830
    %v2832 = vadd.f32 %v2826, %v2831
    %v2833 = vadd.f32 %v2827, %v2831
    %v2834 = vlaneseq
    %v2835 = vshrl.u32 %v2834, 7
    %v2836 = vsub.s32 0, %v2835
    %v2837 = vrot.slane %v75, %v2836
    %v2839 = vsel %vm83, %v2832, 0
    %v2842 = vsel %vm83, %v2833, 0
    %2844 = vmatprep.subr.mxu0 0.0
    %2845 = vmatpush1.msra.mxu0 %v65
    %2846 = vmatprep.subr.mxu0 0.0
    %2847 = vmatpush1.msra.mxu0 %v66
    %2848 = vmatprep.subr.mxu0 0.0
    %2849 = vmatpush1.msra.mxu0 %v67
    %2850 = vmatprep.subr.mxu0 0.0
    %2851 = vmatpush1.msra.mxu0 %v68
    %2852 = vmatprep.subr.mxu0 0.0
    %2853 = vmatpush1.msra.mxu0 0.0
    %2854 = vmatprep.subr.mxu0 0.0
    %2855 = vmatpush1.msra.mxu0 0.0
    %2856 = vmatprep.subr.mxu0 0.0
    %2857 = vmatpush1.msra.mxu0 0.0
    %2858 = vmatprep.subr.mxu0 0.0
    %2859 = vmatpush1.msra.mxu0 0.0
    %2860 = vmatprep.subr.mxu0 0.0
    %2861 = vmatpush1.msra.mxu0 0.0
    %2862 = vmatprep.subr.mxu0 0.0
    %2863 = vmatpush1.msra.mxu0 0.0
    %2864 = vmatprep.subr.mxu0 0.0
    %2865 = vmatpush1.msra.mxu0 0.0
    %2866 = vmatprep.subr.mxu0 0.0
    %2867 = vmatpush1.msra.mxu0 0.0
    %2868 = vmatprep.subr.mxu0 0.0
    %2869 = vmatpush1.msra.mxu0 0.0
    %2870 = vmatprep.subr.mxu0 0.0
    %2871 = vmatpush1.msra.mxu0 0.0
    %2872 = vmatprep.subr.mxu0 0.0
    %2873 = vmatpush1.msra.mxu0 0.0
    %2874 = vmatprep.subr.mxu0 0.0
    %2875 = vmatpush1.msra.mxu0 0.0
    %2876 = vmatprep.subr.mxu0 0.0
    %2877 = vmatpush1.msra.mxu0 0.0
    %2878 = vmatprep.subr.mxu0 0.0
    %2879 = vmatpush1.msra.mxu0 0.0
    %2880 = vmatprep.subr.mxu0 0.0
    %2881 = vmatpush1.msra.mxu0 0.0
    %2882 = vmatprep.subr.mxu0 0.0
    %2883 = vmatpush1.msra.mxu0 0.0
    %2884 = vmatprep.subr.mxu0 0.0
    %2885 = vmatpush1.msra.mxu0 0.0
    %2886 = vmatprep.subr.mxu0 0.0
    %2887 = vmatpush1.msra.mxu0 0.0
    %2888 = vmatprep.subr.mxu0 0.0
    %2889 = vmatpush1.msra.mxu0 0.0
    %2890 = vmatprep.subr.mxu0 0.0
    %2891 = vmatpush1.msra.mxu0 0.0
    %2892 = vmatprep.subr.mxu0 0.0
    %2893 = vmatpush1.msra.mxu0 0.0
    %2894 = vmatprep.subr.mxu0 0.0
    %2895 = vmatpush1.msra.mxu0 0.0
    %2896 = vmatprep.subr.mxu0 0.0
    %2897 = vmatpush1.msra.mxu0 0.0
    %2898 = vmatprep.subr.mxu0 0.0
    %2899 = vmatpush1.msra.mxu0 0.0
    %2900 = vmatprep.subr.mxu0 0.0
    %2901 = vmatpush1.msra.mxu0 0.0
    %2902 = vmatprep.subr.mxu0 0.0
    %2903 = vmatpush1.msra.mxu0 0.0
    %2904 = vmatprep.subr.mxu0 0.0
    %2905 = vmatpush1.msra.mxu0 0.0
    %2906 = vmatprep.subr.mxu0 0.0
    %2907 = vmatpush1.msra.mxu0 0.0
    %2908 = vmatprep.mubr.f32.mxu0 0.0
    %2909 = vmatmul.mubr.f32.gmra.mrb[0].mxu0 %v2839
    %v2910 = vpop.f32.mrb[0].mxu0
    %v2911 = vadd.f32 %v2837, %v2910
    %v2912 = vpop.f32.mrb[0].mxu0
    %2913 = vmatprep.mubr.f32.mxu0 0.0
    %2914 = vmatmul.mubr.f32.gmra.mrb[0].mxu0 %v2842
    %v2915 = vpop.f32.mrb[0].mxu0
    %v2916 = vadd.f32 %v2837, %v2915
    %v2917 = vpop.f32.mrb[0].mxu0
    %2918 = vdwg.mxu0
    %v2919 = vmax.f32 %v2911, 0.0
    %v2920 = vmax.f32 %v2916, 0.0
    %v2921 = vlaneseq
    %v2922 = vshrl.u32 %v2921, 7
    %v2923 = vsub.s32 0, %v2922
    %v2924 = vrot.slane %v76, %v2923
    %2929 = vrot.lane.b32.xlu0 %v65, 64
    %v2930 = vpop.permute.xlu0 %2929
    %2931 = vrot.lane.b32.xlu0 %v66, 64
    %v2932 = vpop.permute.xlu0 %2931
    %2933 = vrot.lane.b32.xlu0 %v67, 64
    %v2934 = vpop.permute.xlu0 %2933
    %2935 = vrot.lane.b32.xlu0 %v68, 64
    %v2936 = vpop.permute.xlu0 %2935
    %vm2937 = vcmask 523264
    %v2939 = vsel %vm2937, %v2919, 0
    %v2942 = vsel %vm2937, %v2920, 0
    %v2944 = vsel %vm2937, %v2930, 0
    %v2946 = vsel %vm2937, %v2932, 0
    %v2948 = vsel %vm2937, %v2934, 0
    %v2950 = vsel %vm2937, %v2936, 0
    %2952 = vmatprep.subr.mxu0 0.0
    %2953 = vmatpush1.xpose.msra.mxu0 %v2944
    %2954 = vmatprep.subr.mxu0 0.0
    %2955 = vmatpush1.xpose.msra.mxu0 %v2946
    %2956 = vmatprep.subr.mxu0 0.0
    %2957 = vmatpush1.xpose.msra.mxu0 %v2948
    %2958 = vmatprep.subr.mxu0 0.0
    %2959 = vmatpush1.xpose.msra.mxu0 %v2950
    %2960 = vmatprep.subr.mxu0 0.0
    %2961 = vmatpush1.xpose.msra.mxu0 0.0
    %2962 = vmatprep.subr.mxu0 0.0
    %2963 = vmatpush1.xpose.msra.mxu0 0.0
    %2964 = vmatprep.subr.mxu0 0.0
    %2965 = vmatpush1.xpose.msra.mxu0 0.0
    %2966 = vmatprep.subr.mxu0 0.0
    %2967 = vmatpush1.xpose.msra.mxu0 0.0
    %2968 = vmatprep.subr.mxu0 0.0
    %2969 = vmatpush1.xpose.msra.mxu0 0.0
    %2970 = vmatprep.subr.mxu0 0.0
    %2971 = vmatpush1.xpose.msra.mxu0 0.0
    %2972 = vmatprep.subr.mxu0 0.0
    %2973 = vmatpush1.xpose.msra.mxu0 0.0
    %2974 = vmatprep.subr.mxu0 0.0
    %2975 = vmatpush1.xpose.msra.mxu0 0.0
    %2976 = vmatprep.subr.mxu0 0.0
    %2977 = vmatpush1.xpose.msra.mxu0 0.0
    %2978 = vmatprep.subr.mxu0 0.0
    %2979 = vmatpush1.xpose.msra.mxu0 0.0
    %2980 = vmatprep.subr.mxu0 0.0
    %2981 = vmatpush1.xpose.msra.mxu0 0.0
    %2982 = vmatprep.subr.mxu0 0.0
    %2983 = vmatpush1.xpose.msra.mxu0 0.0
    %2984 = vmatprep.subr.mxu0 0.0
    %2985 = vmatpush1.xpose.msra.mxu0 0.0
    %2986 = vmatprep.subr.mxu0 0.0
    %2987 = vmatpush1.xpose.msra.mxu0 0.0
    %2988 = vmatprep.subr.mxu0 0.0
    %2989 = vmatpush1.xpose.msra.mxu0 0.0
    %2990 = vmatprep.subr.mxu0 0.0
    %2991 = vmatpush1.xpose.msra.mxu0 0.0
    %2992 = vmatprep.subr.mxu0 0.0
    %2993 = vmatpush1.xpose.msra.mxu0 0.0
    %2994 = vmatprep.subr.mxu0 0.0
    %2995 = vmatpush1.xpose.msra.mxu0 0.0
    %2996 = vmatprep.subr.mxu0 0.0
    %2997 = vmatpush1.xpose.msra.mxu0 0.0
    %2998 = vmatprep.subr.mxu0 0.0
    %2999 = vmatpush1.xpose.msra.mxu0 0.0
    %3000 = vmatprep.subr.mxu0 0.0
    %3001 = vmatpush1.xpose.msra.mxu0 0.0
    %3002 = vmatprep.subr.mxu0 0.0
    %3003 = vmatpush1.xpose.msra.mxu0 0.0
    %3004 = vmatprep.subr.mxu0 0.0
    %3005 = vmatpush1.xpose.msra.mxu0 0.0
    %3006 = vmatprep.subr.mxu0 0.0
    %3007 = vmatpush1.xpose.msra.mxu0 0.0
    %3008 = vmatprep.subr.mxu0 0.0
    %3009 = vmatpush1.xpose.msra.mxu0 0.0
    %3010 = vmatprep.subr.mxu0 0.0
    %3011 = vmatpush1.xpose.msra.mxu0 0.0
    %3012 = vmatprep.subr.mxu0 0.0
    %3013 = vmatpush1.xpose.msra.mxu0 0.0
    %3014 = vmatprep.subr.mxu0 0.0
    %3015 = vmatpush1.xpose.msra.mxu0 0.0
    %3016 = vmatprep.mubr.f32.mxu0 0.0
    %3017 = vmatmul.mubr.f32.gmra.mrb[0].mxu0 %v2939
    %v3018 = vpop.f32.mrb[0].mxu0
    %v3019 = vadd.f32 %v2924, %v3018
    %v3020 = vpop.f32.mrb[0].mxu0
    %3021 = vmatprep.mubr.f32.mxu0 0.0
    %3022 = vmatmul.mubr.f32.gmra.mrb[0].mxu0 %v2942
    %v3023 = vpop.f32.mrb[0].mxu0
    %v3024 = vadd.f32 %v2924, %v3023
    %v3025 = vpop.f32.mrb[0].mxu0
    %3026 = vdwg.mxu0
    %v3027 = vadd.f32 %v2794, %v3019
    %v3028 = vadd.f32 %v2795, %v3024
    %3029 = vst.msk [vmem:[#allocation8] sm:$0xff] %vm83, %v3027
    %3030 = vst.msk [vmem:[#allocation8 + $0x8] sm:$0xff] %vm83, %v3028
    // Predicated region
    $region30: #{tpu_custom_call.1} parent=1 // pred_check
      _
    $region31: #{tpu_custom_call.1} parent=1 // pred_check_branch
      %3032 = sbr.rel (0) target = $region33
    $region32: #{tpu_custom_call.1} parent=1 // pred_region
      %s3034 = ssub.s32 256, 256
      %3035 = vsyncadd [#allocation4], %s3034
      %s3036 = sshll.u32 [#allocation8], 4
      %s3037 = int_to_ptr.vmem [resolvable:$true] %s3036
      %3042 = dma.vmem_to_hbm [thread:$0]  %s3037, 256, %s4, [#allocation4], 128, 128, 8
    $region33: #{tpu_custom_call.1} parent=1 // pred_fallthru
      _
    // Predicated region
    $region34: #{tpu_custom_call.1} parent=1 // pred_check
      _
    $region35: #{tpu_custom_call.1} parent=1 // pred_check_branch
      %3044 = sbr.rel (0) target = $region37
    $region36: #{tpu_custom_call.1} parent=1 // pred_region
      %3045 = dma.done [#allocation4], 256
    $region37: #{tpu_custom_call.1} parent=1 // pred_fallthru
      _
    %3046 = vsyncpa [#allocation3], 1
    %3047 = vsyncpa [#allocation6], 1
    %3048 = vsyncpa [#allocation4], 1

</llo_original>
